<compile_context>
chip_gen: v5e
topology: v5e:2x2
jax: 0.10.0
libtpu: 0.0.40
codegen_flags: <defaults>
</compile_context>

<pallas_src>
import numpy as np

import jax
import jax.numpy as jnp
from jax.experimental import pallas as pl
from jax.experimental.pallas import tpu as pltpu


# ---------------------------------------------------------------------------
# Fused LeNet kernel (one grid step == one image, everything stays in VMEM)
# ---------------------------------------------------------------------------
def _lenet_kernel(x_ref, m1_ref, b1_ref, pr1_ref, pc1_ref,
                  m2_ref, b2_ref, pr2_ref, pc2_ref,
                  wf1_ref, bf1_ref, wf2_ref, bf2_ref, wf3_ref, bf3_ref,
                  o_ref, p1_scr, p2_scr):
    f32 = jnp.float32

    def dot(a, b):
        return jnp.dot(a, b, preferred_element_type=f32)

    def sigmoid(z):
        # exp -> EUP; exact reciprocal instead of a VALU divide chain.
        return pl.reciprocal(1.0 + jnp.exp(-z), approx=False)

    # ---- conv1 (5x5, 1->6) + sigmoid : output (28, 28*6) pixel-major ----
    s1 = dot(x_ref[0, 0:28, :], m1_ref[0])
    for i in range(1, 5):
        s1 = s1 + dot(x_ref[0, i:i + 28, :], m1_ref[i])
    a1 = sigmoid(s1 + b1_ref[...])                       # (28, 168)

    # ---- 2x2 avg-pool -> (14, 14*6) ----
    p1_scr[...] = dot(dot(pr1_ref[...], a1), pc1_ref[...])

    # ---- conv2 (5x5, 6->16) + sigmoid : output (10, 10*16) ----
    s2 = dot(p1_scr[0:10, :], m2_ref[0])
    for i in range(1, 5):
        s2 = s2 + dot(p1_scr[i:i + 10, :], m2_ref[i])
    a2 = sigmoid(s2 + b2_ref[...])                       # (10, 160)

    # ---- 2x2 avg-pool -> (5, 5*16) ----
    p2_scr[...] = dot(dot(pr2_ref[...], a2), pc2_ref[...])

    # ---- fc1 (400 -> 120) + sigmoid; consumes pixel-major rows directly ----
    f1 = bf1_ref[...]                                    # (1, 120)
    for y in range(5):
        f1 = f1 + dot(p2_scr[y:y + 1, :], wf1_ref[y])
    f1 = sigmoid(f1)

    # ---- fc2 (120 -> 84) + sigmoid, fc3 (84 -> 10) ----
    f2 = sigmoid(dot(f1, wf2_ref[...]) + bf2_ref[...])   # (1, 84)
    f3 = dot(f2, wf3_ref[...]) + bf3_ref[...]            # (1, 10)

    o_ref[0] = f3.astype(o_ref.dtype)


# ---------------------------------------------------------------------------
# One-time (init) construction of the layout-folded constant matrices
# ---------------------------------------------------------------------------
def build_consts(params):
    w1 = np.asarray(params["conv1_w"], np.float32)    # (5,5,1,6)   HWIO
    b1 = np.asarray(params["conv1_b"], np.float32)    # (6,)
    w2 = np.asarray(params["conv2_w"], np.float32)    # (5,5,6,16)
    b2 = np.asarray(params["conv2_b"], np.float32)    # (16,)
    wf1 = np.asarray(params["fc1_w"], np.float32)     # (400,120)
    bf1 = np.asarray(params["fc1_b"], np.float32)
    wf2 = np.asarray(params["fc2_w"], np.float32)     # (120,84)
    bf2 = np.asarray(params["fc2_b"], np.float32)
    wf3 = np.asarray(params["fc3_w"], np.float32)     # (84,10)
    bf3 = np.asarray(params["fc3_b"], np.float32)

    # conv1: per kernel-row matmul  (32,) -> (28*6,),  column = x*6 + cout
    m1 = np.zeros((5, 32, 28 * 6), np.float32)
    for i in range(5):
        for j in range(5):
            for x in range(28):
                m1[i, x + j, x * 6:(x + 1) * 6] = w1[i, j, 0, :]
    b1row = np.tile(b1, 28)[None, :]                  # (1, 168)

    # conv2: per kernel-row matmul  (14*6,) -> (10*16,)
    m2 = np.zeros((5, 14 * 6, 10 * 16), np.float32)
    for i in range(5):
        for j in range(5):
            for x in range(10):
                m2[i, (x + j) * 6:(x + j + 1) * 6, x * 16:(x + 1) * 16] = w2[i, j]
    b2row = np.tile(b2, 10)[None, :]                  # (1, 160)

    # 2x2 avg-pool as left (row) / right (column, channel-preserving) matmuls
    def pool_rows(h):
        pr = np.zeros((h // 2, h), np.float32)
        for r in range(h // 2):
            pr[r, 2 * r] = 0.5
            pr[r, 2 * r + 1] = 0.5
        return pr

    def pool_cols(w, c):
        pc = np.zeros((w * c, (w // 2) * c), np.float32)
        for xo in range(w // 2):
            for dx in range(2):
                for ch in range(c):
                    pc[(2 * xo + dx) * c + ch, xo * c + ch] = 0.5
        return pc

    pr1 = pool_rows(28)          # (14, 28)
    pc1 = pool_cols(28, 6)       # (168, 84)
    pr2 = pool_rows(10)          # (5, 10)
    pc2 = pool_cols(10, 16)      # (160, 80)

    # fc1 weight permuted so the pixel-major (y, x*16+c) rows reproduce the
    # PyTorch NCHW flatten order c*25 + y*5 + x.
    wf1p = wf1.reshape(16, 5, 5, 120).transpose(1, 2, 0, 3).reshape(5, 80, 120)

    consts = (m1, b1row, pr1, pc1, m2, b2row, pr2, pc2,
              wf1p, bf1[None, :], wf2, bf2[None, :], wf3, bf3[None, :])
    return tuple(jnp.asarray(c) for c in consts)


# ---------------------------------------------------------------------------
# Forward (single pallas_call, no padding / im2col / transposes on the host)
# ---------------------------------------------------------------------------
def lenet_forward(consts, x_nchw):
    B = x_nchw.shape[0]
    x = x_nchw.astype(jnp.float32).reshape(B, 32, 32)   # Cin == 1

    in_specs = [pl.BlockSpec((1, 32, 32), lambda b: (b, 0, 0))]
    for c in consts:  # weights: full-array blocks, resident across the grid
        in_specs.append(pl.BlockSpec(c.shape, lambda b, n=c.ndim: (0,) * n))

    out = pl.pallas_call(
        _lenet_kernel,
        out_shape=jax.ShapeDtypeStruct((B, 1, 10), jnp.float32),
        grid_spec=pltpu.PrefetchScalarGridSpec(
            num_scalar_prefetch=0,
            grid=(B,),
            in_specs=in_specs,
            out_specs=pl.BlockSpec((1, 1, 10), lambda b: (b, 0, 0)),
            scratch_shapes=[pltpu.VMEM((14, 84), jnp.float32),
                            pltpu.VMEM((5, 80), jnp.float32)],
        ),
        compiler_params=pltpu.CompilerParams(
            dimension_semantics=("parallel",)),
    )(x, *consts)
    return out.reshape(B, 10)


# ---------------------------------------------------------------------------
# Parameters and a pure-jnp reference (for self-checking only)
# ---------------------------------------------------------------------------
def init_params(key):
    ks = jax.random.split(key, 10)
    scale = 0.1
    return {
        "conv1_w": scale * jax.random.normal(ks[0], (5, 5, 1, 6), jnp.float32),
        "conv1_b": scale * jax.random.normal(ks[1], (6,), jnp.float32),
        "conv2_w": scale * jax.random.normal(ks[2], (5, 5, 6, 16), jnp.float32),
        "conv2_b": scale * jax.random.normal(ks[3], (16,), jnp.float32),
        "fc1_w": scale * jax.random.normal(ks[4], (16 * 5 * 5, 120), jnp.float32),
        "fc1_b": scale * jax.random.normal(ks[5], (120,), jnp.float32),
        "fc2_w": scale * jax.random.normal(ks[6], (120, 84), jnp.float32),
        "fc2_b": scale * jax.random.normal(ks[7], (84,), jnp.float32),
        "fc3_w": scale * jax.random.normal(ks[8], (84, 10), jnp.float32),
        "fc3_b": scale * jax.random.normal(ks[9], (10,), jnp.float32),
    }


def lenet_reference(params, x_nchw):
    x = jnp.transpose(x_nchw.astype(jnp.float32), (0, 2, 3, 1))  # NHWC

    def conv_sig(x, w, b):
        B, H, W, Cin = x.shape
        kh, kw, _, Cout = w.shape
        Ho, Wo = H - kh + 1, W - kw + 1
        patches = jnp.stack(
            [x[:, i:i + Ho, j:j + Wo, :] for i in range(kh) for j in range(kw)],
            axis=3).reshape(B * Ho * Wo, kh * kw * Cin)
        y = patches @ w.reshape(kh * kw * Cin, Cout) + b
        return jax.nn.sigmoid(y).reshape(B, Ho, Wo, Cout)

    def pool(x):
        B, H, W, C = x.shape
        return x.reshape(B, H // 2, 2, W // 2, 2, C).mean(axis=(2, 4))

    x = pool(conv_sig(x, params["conv1_w"], params["conv1_b"]))
    x = pool(conv_sig(x, params["conv2_w"], params["conv2_b"]))
    x = jnp.transpose(x, (0, 3, 1, 2)).reshape(x.shape[0], -1)
    x = jax.nn.sigmoid(x @ params["fc1_w"] + params["fc1_b"])
    x = jax.nn.sigmoid(x @ params["fc2_w"] + params["fc2_b"])
    return x @ params["fc3_w"] + params["fc3_b"]


if __name__ == "__main__":
    key = jax.random.PRNGKey(0)
    k_x, k_p = jax.random.split(key)
    # LeNet requires 32x32 single-channel input for the 16*5*5 flatten.
    x = jax.random.normal(k_x, (2, 1, 32, 32), jnp.float32)
    params = init_params(k_p)
    consts = build_consts(params)          # one-time layout folding

    fwd = jax.jit(lenet_forward)
    y = jax.block_until_ready(fwd(consts, x))
    assert y.shape == (2, 10), y.shape
    assert y.dtype == jnp.float32

    y_ref = jax.block_until_ready(lenet_reference(params, x))
    err = float(jnp.max(jnp.abs(y - y_ref)))
    assert jnp.allclose(y, y_ref, atol=1e-3, rtol=1e-3), f"max |err| = {err}"
    print("KERNEL_OK")
</pallas_src>

<mosaic_0001>
module attributes {stable_mosaic.version = 11 : i64} {
  func.func @_lenet_kernel(%arg0: i32, %arg1: memref<1x32x32xf32, #tpu.memory_space<vmem>>, %arg2: memref<5x32x168xf32, #tpu.memory_space<vmem>>, %arg3: memref<1x168xf32, #tpu.memory_space<vmem>>, %arg4: memref<14x28xf32, #tpu.memory_space<vmem>>, %arg5: memref<168x84xf32, #tpu.memory_space<vmem>>, %arg6: memref<5x84x160xf32, #tpu.memory_space<vmem>>, %arg7: memref<1x160xf32, #tpu.memory_space<vmem>>, %arg8: memref<5x10xf32, #tpu.memory_space<vmem>>, %arg9: memref<160x80xf32, #tpu.memory_space<vmem>>, %arg10: memref<5x80x120xf32, #tpu.memory_space<vmem>>, %arg11: memref<1x120xf32, #tpu.memory_space<vmem>>, %arg12: memref<120x84xf32, #tpu.memory_space<vmem>>, %arg13: memref<1x84xf32, #tpu.memory_space<vmem>>, %arg14: memref<84x10xf32, #tpu.memory_space<vmem>>, %arg15: memref<1x10xf32, #tpu.memory_space<vmem>>, %arg16: memref<1x1x10xf32, #tpu.memory_space<vmem>>, %arg17: memref<14x84xf32, #tpu.memory_space<vmem>>, %arg18: memref<5x80xf32, #tpu.memory_space<vmem>>) attributes {dimension_semantics = [#tpu.dimension_semantics<parallel>], iteration_bounds = array<i64: 2>, scalar_prefetch = 0 : i64, scratch_operands = 2 : i64, tpu.core_type = #tpu.core_type<tc>, window_params = [{transform_indices = @transform_0, window_bounds = array<i64: 1, 32, 32>}, {pipeline_mode = #tpu.pipeline_mode<synchronous>, transform_indices = @transform_1, window_bounds = array<i64: 5, 32, 168>}, {pipeline_mode = #tpu.pipeline_mode<synchronous>, transform_indices = @transform_2, window_bounds = array<i64: 1, 168>}, {pipeline_mode = #tpu.pipeline_mode<synchronous>, transform_indices = @transform_3, window_bounds = array<i64: 14, 28>}, {pipeline_mode = #tpu.pipeline_mode<synchronous>, transform_indices = @transform_4, window_bounds = array<i64: 168, 84>}, {pipeline_mode = #tpu.pipeline_mode<synchronous>, transform_indices = @transform_5, window_bounds = array<i64: 5, 84, 160>}, {pipeline_mode = #tpu.pipeline_mode<synchronous>, transform_indices = @transform_6, window_bounds = array<i64: 1, 160>}, {pipeline_mode = #tpu.pipeline_mode<synchronous>, transform_indices = @transform_7, window_bounds = array<i64: 5, 10>}, {pipeline_mode = #tpu.pipeline_mode<synchronous>, transform_indices = @transform_8, window_bounds = array<i64: 160, 80>}, {pipeline_mode = #tpu.pipeline_mode<synchronous>, transform_indices = @transform_9, window_bounds = array<i64: 5, 80, 120>}, {pipeline_mode = #tpu.pipeline_mode<synchronous>, transform_indices = @transform_10, window_bounds = array<i64: 1, 120>}, {pipeline_mode = #tpu.pipeline_mode<synchronous>, transform_indices = @transform_11, window_bounds = array<i64: 120, 84>}, {pipeline_mode = #tpu.pipeline_mode<synchronous>, transform_indices = @transform_12, window_bounds = array<i64: 1, 84>}, {pipeline_mode = #tpu.pipeline_mode<synchronous>, transform_indices = @transform_13, window_bounds = array<i64: 84, 10>}, {pipeline_mode = #tpu.pipeline_mode<synchronous>, transform_indices = @transform_14, window_bounds = array<i64: 1, 10>}, {transform_indices = @transform_15, window_bounds = array<i64: 1, 1, 10>}]} {
    %c0 = arith.constant 0 : index
    %c0_0 = arith.constant 0 : index
    %c0_1 = arith.constant 0 : index
    %0 = vector.load %arg1[%c0, %c0_0, %c0_1] : memref<1x32x32xf32, #tpu.memory_space<vmem>>, vector<1x28x32xf32>
    %1 = vector.shape_cast %0 : vector<1x28x32xf32> to vector<28x32xf32>
    %c0_2 = arith.constant 0 : index
    %c0_3 = arith.constant 0 : index
    %c0_4 = arith.constant 0 : index
    %2 = vector.load %arg2[%c0_2, %c0_3, %c0_4] : memref<5x32x168xf32, #tpu.memory_space<vmem>>, vector<1x32x168xf32>
    %3 = vector.shape_cast %2 : vector<1x32x168xf32> to vector<32x168xf32>
    %cst = arith.constant dense<0.000000e+00> : vector<28x168xf32>
    %4 = tpu.matmul %1, %3, %cst {dimension_numbers = #tpu.dot_dimension_numbers<[1], [0], [0], [1], [0, 0, 1, 1], [], []>} : vector<28x32xf32>, vector<32x168xf32>, vector<28x168xf32> -> vector<28x168xf32>
    %c0_5 = arith.constant 0 : index
    %c1 = arith.constant 1 : index
    %c0_6 = arith.constant 0 : index
    %5 = vector.load %arg1[%c0_5, %c1, %c0_6] : memref<1x32x32xf32, #tpu.memory_space<vmem>>, vector<1x28x32xf32>
    %6 = vector.shape_cast %5 : vector<1x28x32xf32> to vector<28x32xf32>
    %c1_7 = arith.constant 1 : index
    %c0_8 = arith.constant 0 : index
    %c0_9 = arith.constant 0 : index
    %7 = vector.load %arg2[%c1_7, %c0_8, %c0_9] : memref<5x32x168xf32, #tpu.memory_space<vmem>>, vector<1x32x168xf32>
    %8 = vector.shape_cast %7 : vector<1x32x168xf32> to vector<32x168xf32>
    %cst_10 = arith.constant dense<0.000000e+00> : vector<28x168xf32>
    %9 = tpu.matmul %6, %8, %cst_10 {dimension_numbers = #tpu.dot_dimension_numbers<[1], [0], [0], [1], [0, 0, 1, 1], [], []>} : vector<28x32xf32>, vector<32x168xf32>, vector<28x168xf32> -> vector<28x168xf32>
    %10 = arith.addf %4, %9 : vector<28x168xf32>
    %c0_11 = arith.constant 0 : index
    %c2 = arith.constant 2 : index
    %c0_12 = arith.constant 0 : index
    %11 = vector.load %arg1[%c0_11, %c2, %c0_12] : memref<1x32x32xf32, #tpu.memory_space<vmem>>, vector<1x28x32xf32>
    %12 = vector.shape_cast %11 : vector<1x28x32xf32> to vector<28x32xf32>
    %c2_13 = arith.constant 2 : index
    %c0_14 = arith.constant 0 : index
    %c0_15 = arith.constant 0 : index
    %13 = vector.load %arg2[%c2_13, %c0_14, %c0_15] : memref<5x32x168xf32, #tpu.memory_space<vmem>>, vector<1x32x168xf32>
    %14 = vector.shape_cast %13 : vector<1x32x168xf32> to vector<32x168xf32>
    %cst_16 = arith.constant dense<0.000000e+00> : vector<28x168xf32>
    %15 = tpu.matmul %12, %14, %cst_16 {dimension_numbers = #tpu.dot_dimension_numbers<[1], [0], [0], [1], [0, 0, 1, 1], [], []>} : vector<28x32xf32>, vector<32x168xf32>, vector<28x168xf32> -> vector<28x168xf32>
    %16 = arith.addf %10, %15 : vector<28x168xf32>
    %c0_17 = arith.constant 0 : index
    %c3 = arith.constant 3 : index
    %c0_18 = arith.constant 0 : index
    %17 = vector.load %arg1[%c0_17, %c3, %c0_18] : memref<1x32x32xf32, #tpu.memory_space<vmem>>, vector<1x28x32xf32>
    %18 = vector.shape_cast %17 : vector<1x28x32xf32> to vector<28x32xf32>
    %c3_19 = arith.constant 3 : index
    %c0_20 = arith.constant 0 : index
    %c0_21 = arith.constant 0 : index
    %19 = vector.load %arg2[%c3_19, %c0_20, %c0_21] : memref<5x32x168xf32, #tpu.memory_space<vmem>>, vector<1x32x168xf32>
    %20 = vector.shape_cast %19 : vector<1x32x168xf32> to vector<32x168xf32>
    %cst_22 = arith.constant dense<0.000000e+00> : vector<28x168xf32>
    %21 = tpu.matmul %18, %20, %cst_22 {dimension_numbers = #tpu.dot_dimension_numbers<[1], [0], [0], [1], [0, 0, 1, 1], [], []>} : vector<28x32xf32>, vector<32x168xf32>, vector<28x168xf32> -> vector<28x168xf32>
    %22 = arith.addf %16, %21 : vector<28x168xf32>
    %c0_23 = arith.constant 0 : index
    %c4 = arith.constant 4 : index
    %c0_24 = arith.constant 0 : index
    %23 = vector.load %arg1[%c0_23, %c4, %c0_24] : memref<1x32x32xf32, #tpu.memory_space<vmem>>, vector<1x28x32xf32>
    %24 = vector.shape_cast %23 : vector<1x28x32xf32> to vector<28x32xf32>
    %c4_25 = arith.constant 4 : index
    %c0_26 = arith.constant 0 : index
    %c0_27 = arith.constant 0 : index
    %25 = vector.load %arg2[%c4_25, %c0_26, %c0_27] : memref<5x32x168xf32, #tpu.memory_space<vmem>>, vector<1x32x168xf32>
    %26 = vector.shape_cast %25 : vector<1x32x168xf32> to vector<32x168xf32>
    %cst_28 = arith.constant dense<0.000000e+00> : vector<28x168xf32>
    %27 = tpu.matmul %24, %26, %cst_28 {dimension_numbers = #tpu.dot_dimension_numbers<[1], [0], [0], [1], [0, 0, 1, 1], [], []>} : vector<28x32xf32>, vector<32x168xf32>, vector<28x168xf32> -> vector<28x168xf32>
    %28 = arith.addf %22, %27 : vector<28x168xf32>
    %c0_29 = arith.constant 0 : index
    %c0_30 = arith.constant 0 : index
    %29 = vector.load %arg3[%c0_29, %c0_30] : memref<1x168xf32, #tpu.memory_space<vmem>>, vector<1x168xf32>
    %30 = vector.broadcast %29 : vector<1x168xf32> to vector<28x168xf32>
    %31 = arith.addf %28, %30 : vector<28x168xf32>
    %cst_31 = arith.constant 0.000000e+00 : f32
    %32 = vector.broadcast %cst_31 : f32 to vector<28x168xf32>
    %33 = arith.subf %32, %31 : vector<28x168xf32>
    %34 = math.exp %33 : vector<28x168xf32>
    %cst_32 = arith.constant 1.000000e+00 : f32
    %35 = vector.broadcast %cst_32 : f32 to vector<28x168xf32>
    %36 = arith.addf %35, %34 : vector<28x168xf32>
    %37 = tpu.reciprocal %36 : vector<28x168xf32> -> vector<28x168xf32>
    %c0_33 = arith.constant 0 : index
    %c0_34 = arith.constant 0 : index
    %38 = vector.load %arg4[%c0_33, %c0_34] : memref<14x28xf32, #tpu.memory_space<vmem>>, vector<14x28xf32>
    %cst_35 = arith.constant dense<0.000000e+00> : vector<14x168xf32>
    %39 = tpu.matmul %38, %37, %cst_35 {dimension_numbers = #tpu.dot_dimension_numbers<[1], [0], [0], [1], [0, 0, 1, 1], [], []>} : vector<14x28xf32>, vector<28x168xf32>, vector<14x168xf32> -> vector<14x168xf32>
    %c0_36 = arith.constant 0 : index
    %c0_37 = arith.constant 0 : index
    %40 = vector.load %arg5[%c0_36, %c0_37] : memref<168x84xf32, #tpu.memory_space<vmem>>, vector<168x84xf32>
    %cst_38 = arith.constant dense<0.000000e+00> : vector<14x84xf32>
    %41 = tpu.matmul %39, %40, %cst_38 {dimension_numbers = #tpu.dot_dimension_numbers<[1], [0], [0], [1], [0, 0, 1, 1], [], []>} : vector<14x168xf32>, vector<168x84xf32>, vector<14x84xf32> -> vector<14x84xf32>
    %c0_39 = arith.constant 0 : index
    %c0_40 = arith.constant 0 : index
    %42 = vector.load %arg17[%c0_39, %c0_40] : memref<14x84xf32, #tpu.memory_space<vmem>>, vector<14x84xf32>
    tpu.vector_store %arg17[%c0_39, %c0_40], %41 {strides = array<i32>} : memref<14x84xf32, #tpu.memory_space<vmem>>, vector<14x84xf32>,
    %c0_41 = arith.constant 0 : index
    %c0_42 = arith.constant 0 : index
    %43 = vector.load %arg17[%c0_41, %c0_42] : memref<14x84xf32, #tpu.memory_space<vmem>>, vector<10x84xf32>
    %c0_43 = arith.constant 0 : index
    %c0_44 = arith.constant 0 : index
    %c0_45 = arith.constant 0 : index
    %44 = vector.load %arg6[%c0_43, %c0_44, %c0_45] : memref<5x84x160xf32, #tpu.memory_space<vmem>>, vector<1x84x160xf32>
    %45 = vector.shape_cast %44 : vector<1x84x160xf32> to vector<84x160xf32>
    %cst_46 = arith.constant dense<0.000000e+00> : vector<10x160xf32>
    %46 = tpu.matmul %43, %45, %cst_46 {dimension_numbers = #tpu.dot_dimension_numbers<[1], [0], [0], [1], [0, 0, 1, 1], [], []>} : vector<10x84xf32>, vector<84x160xf32>, vector<10x160xf32> -> vector<10x160xf32>
    %c1_47 = arith.constant 1 : index
    %c0_48 = arith.constant 0 : index
    %47 = vector.load %arg17[%c1_47, %c0_48] : memref<14x84xf32, #tpu.memory_space<vmem>>, vector<10x84xf32>
    %c1_49 = arith.constant 1 : index
    %c0_50 = arith.constant 0 : index
    %c0_51 = arith.constant 0 : index
    %48 = vector.load %arg6[%c1_49, %c0_50, %c0_51] : memref<5x84x160xf32, #tpu.memory_space<vmem>>, vector<1x84x160xf32>
    %49 = vector.shape_cast %48 : vector<1x84x160xf32> to vector<84x160xf32>
    %cst_52 = arith.constant dense<0.000000e+00> : vector<10x160xf32>
    %50 = tpu.matmul %47, %49, %cst_52 {dimension_numbers = #tpu.dot_dimension_numbers<[1], [0], [0], [1], [0, 0, 1, 1], [], []>} : vector<10x84xf32>, vector<84x160xf32>, vector<10x160xf32> -> vector<10x160xf32>
    %51 = arith.addf %46, %50 : vector<10x160xf32>
    %c2_53 = arith.constant 2 : index
    %c0_54 = arith.constant 0 : index
    %52 = vector.load %arg17[%c2_53, %c0_54] : memref<14x84xf32, #tpu.memory_space<vmem>>, vector<10x84xf32>
    %c2_55 = arith.constant 2 : index
    %c0_56 = arith.constant 0 : index
    %c0_57 = arith.constant 0 : index
    %53 = vector.load %arg6[%c2_55, %c0_56, %c0_57] : memref<5x84x160xf32, #tpu.memory_space<vmem>>, vector<1x84x160xf32>
    %54 = vector.shape_cast %53 : vector<1x84x160xf32> to vector<84x160xf32>
    %cst_58 = arith.constant dense<0.000000e+00> : vector<10x160xf32>
    %55 = tpu.matmul %52, %54, %cst_58 {dimension_numbers = #tpu.dot_dimension_numbers<[1], [0], [0], [1], [0, 0, 1, 1], [], []>} : vector<10x84xf32>, vector<84x160xf32>, vector<10x160xf32> -> vector<10x160xf32>
    %56 = arith.addf %51, %55 : vector<10x160xf32>
    %c3_59 = arith.constant 3 : index
    %c0_60 = arith.constant 0 : index
    %57 = vector.load %arg17[%c3_59, %c0_60] : memref<14x84xf32, #tpu.memory_space<vmem>>, vector<10x84xf32>
    %c3_61 = arith.constant 3 : index
    %c0_62 = arith.constant 0 : index
    %c0_63 = arith.constant 0 : index
    %58 = vector.load %arg6[%c3_61, %c0_62, %c0_63] : memref<5x84x160xf32, #tpu.memory_space<vmem>>, vector<1x84x160xf32>
    %59 = vector.shape_cast %58 : vector<1x84x160xf32> to vector<84x160xf32>
    %cst_64 = arith.constant dense<0.000000e+00> : vector<10x160xf32>
    %60 = tpu.matmul %57, %59, %cst_64 {dimension_numbers = #tpu.dot_dimension_numbers<[1], [0], [0], [1], [0, 0, 1, 1], [], []>} : vector<10x84xf32>, vector<84x160xf32>, vector<10x160xf32> -> vector<10x160xf32>
    %61 = arith.addf %56, %60 : vector<10x160xf32>
    %c4_65 = arith.constant 4 : index
    %c0_66 = arith.constant 0 : index
    %62 = vector.load %arg17[%c4_65, %c0_66] : memref<14x84xf32, #tpu.memory_space<vmem>>, vector<10x84xf32>
    %c4_67 = arith.constant 4 : index
    %c0_68 = arith.constant 0 : index
    %c0_69 = arith.constant 0 : index
    %63 = vector.load %arg6[%c4_67, %c0_68, %c0_69] : memref<5x84x160xf32, #tpu.memory_space<vmem>>, vector<1x84x160xf32>
    %64 = vector.shape_cast %63 : vector<1x84x160xf32> to vector<84x160xf32>
    %cst_70 = arith.constant dense<0.000000e+00> : vector<10x160xf32>
    %65 = tpu.matmul %62, %64, %cst_70 {dimension_numbers = #tpu.dot_dimension_numbers<[1], [0], [0], [1], [0, 0, 1, 1], [], []>} : vector<10x84xf32>, vector<84x160xf32>, vector<10x160xf32> -> vector<10x160xf32>
    %66 = arith.addf %61, %65 : vector<10x160xf32>
    %c0_71 = arith.constant 0 : index
    %c0_72 = arith.constant 0 : index
    %67 = vector.load %arg7[%c0_71, %c0_72] : memref<1x160xf32, #tpu.memory_space<vmem>>, vector<1x160xf32>
    %68 = vector.broadcast %67 : vector<1x160xf32> to vector<10x160xf32>
    %69 = arith.addf %66, %68 : vector<10x160xf32>
    %cst_73 = arith.constant 0.000000e+00 : f32
    %70 = vector.broadcast %cst_73 : f32 to vector<10x160xf32>
    %71 = arith.subf %70, %69 : vector<10x160xf32>
    %72 = math.exp %71 : vector<10x160xf32>
    %cst_74 = arith.constant 1.000000e+00 : f32
    %73 = vector.broadcast %cst_74 : f32 to vector<10x160xf32>
    %74 = arith.addf %73, %72 : vector<10x160xf32>
    %75 = tpu.reciprocal %74 : vector<10x160xf32> -> vector<10x160xf32>
    %c0_75 = arith.constant 0 : index
    %c0_76 = arith.constant 0 : index
    %76 = vector.load %arg8[%c0_75, %c0_76] : memref<5x10xf32, #tpu.memory_space<vmem>>, vector<5x10xf32>
    %cst_77 = arith.constant dense<0.000000e+00> : vector<5x160xf32>
    %77 = tpu.matmul %76, %75, %cst_77 {dimension_numbers = #tpu.dot_dimension_numbers<[1], [0], [0], [1], [0, 0, 1, 1], [], []>} : vector<5x10xf32>, vector<10x160xf32>, vector<5x160xf32> -> vector<5x160xf32>
    %c0_78 = arith.constant 0 : index
    %c0_79 = arith.constant 0 : index
    %78 = vector.load %arg9[%c0_78, %c0_79] : memref<160x80xf32, #tpu.memory_space<vmem>>, vector<160x80xf32>
    %cst_80 = arith.constant dense<0.000000e+00> : vector<5x80xf32>
    %79 = tpu.matmul %77, %78, %cst_80 {dimension_numbers = #tpu.dot_dimension_numbers<[1], [0], [0], [1], [0, 0, 1, 1], [], []>} : vector<5x160xf32>, vector<160x80xf32>, vector<5x80xf32> -> vector<5x80xf32>
    %c0_81 = arith.constant 0 : index
    %c0_82 = arith.constant 0 : index
    %80 = vector.load %arg18[%c0_81, %c0_82] : memref<5x80xf32, #tpu.memory_space<vmem>>, vector<5x80xf32>
    tpu.vector_store %arg18[%c0_81, %c0_82], %79 {strides = array<i32>} : memref<5x80xf32, #tpu.memory_space<vmem>>, vector<5x80xf32>,
    %c0_83 = arith.constant 0 : index
    %c0_84 = arith.constant 0 : index
    %81 = vector.load %arg11[%c0_83, %c0_84] : memref<1x120xf32, #tpu.memory_space<vmem>>, vector<1x120xf32>
    %c0_85 = arith.constant 0 : index
    %c0_86 = arith.constant 0 : index
    %82 = vector.load %arg18[%c0_85, %c0_86] : memref<5x80xf32, #tpu.memory_space<vmem>>, vector<1x80xf32>
    %c0_87 = arith.constant 0 : index
    %c0_88 = arith.constant 0 : index
    %c0_89 = arith.constant 0 : index
    %83 = vector.load %arg10[%c0_87, %c0_88, %c0_89] : memref<5x80x120xf32, #tpu.memory_space<vmem>>, vector<1x80x120xf32>
    %84 = vector.shape_cast %83 : vector<1x80x120xf32> to vector<80x120xf32>
    %cst_90 = arith.constant dense<0.000000e+00> : vector<1x120xf32>
    %85 = tpu.matmul %82, %84, %cst_90 {dimension_numbers = #tpu.dot_dimension_numbers<[1], [0], [0], [1], [0, 0, 1, 1], [], []>} : vector<1x80xf32>, vector<80x120xf32>, vector<1x120xf32> -> vector<1x120xf32>
    %86 = arith.addf %81, %85 : vector<1x120xf32>
    %c1_91 = arith.constant 1 : index
    %c0_92 = arith.constant 0 : index
    %87 = vector.load %arg18[%c1_91, %c0_92] : memref<5x80xf32, #tpu.memory_space<vmem>>, vector<1x80xf32>
    %c1_93 = arith.constant 1 : index
    %c0_94 = arith.constant 0 : index
    %c0_95 = arith.constant 0 : index
    %88 = vector.load %arg10[%c1_93, %c0_94, %c0_95] : memref<5x80x120xf32, #tpu.memory_space<vmem>>, vector<1x80x120xf32>
    %89 = vector.shape_cast %88 : vector<1x80x120xf32> to vector<80x120xf32>
    %cst_96 = arith.constant dense<0.000000e+00> : vector<1x120xf32>
    %90 = tpu.matmul %87, %89, %cst_96 {dimension_numbers = #tpu.dot_dimension_numbers<[1], [0], [0], [1], [0, 0, 1, 1], [], []>} : vector<1x80xf32>, vector<80x120xf32>, vector<1x120xf32> -> vector<1x120xf32>
    %91 = arith.addf %86, %90 : vector<1x120xf32>
    %c2_97 = arith.constant 2 : index
    %c0_98 = arith.constant 0 : index
    %92 = vector.load %arg18[%c2_97, %c0_98] : memref<5x80xf32, #tpu.memory_space<vmem>>, vector<1x80xf32>
    %c2_99 = arith.constant 2 : index
    %c0_100 = arith.constant 0 : index
    %c0_101 = arith.constant 0 : index
    %93 = vector.load %arg10[%c2_99, %c0_100, %c0_101] : memref<5x80x120xf32, #tpu.memory_space<vmem>>, vector<1x80x120xf32>
    %94 = vector.shape_cast %93 : vector<1x80x120xf32> to vector<80x120xf32>
    %cst_102 = arith.constant dense<0.000000e+00> : vector<1x120xf32>
    %95 = tpu.matmul %92, %94, %cst_102 {dimension_numbers = #tpu.dot_dimension_numbers<[1], [0], [0], [1], [0, 0, 1, 1], [], []>} : vector<1x80xf32>, vector<80x120xf32>, vector<1x120xf32> -> vector<1x120xf32>
    %96 = arith.addf %91, %95 : vector<1x120xf32>
    %c3_103 = arith.constant 3 : index
    %c0_104 = arith.constant 0 : index
    %97 = vector.load %arg18[%c3_103, %c0_104] : memref<5x80xf32, #tpu.memory_space<vmem>>, vector<1x80xf32>
    %c3_105 = arith.constant 3 : index
    %c0_106 = arith.constant 0 : index
    %c0_107 = arith.constant 0 : index
    %98 = vector.load %arg10[%c3_105, %c0_106, %c0_107] : memref<5x80x120xf32, #tpu.memory_space<vmem>>, vector<1x80x120xf32>
    %99 = vector.shape_cast %98 : vector<1x80x120xf32> to vector<80x120xf32>
    %cst_108 = arith.constant dense<0.000000e+00> : vector<1x120xf32>
    %100 = tpu.matmul %97, %99, %cst_108 {dimension_numbers = #tpu.dot_dimension_numbers<[1], [0], [0], [1], [0, 0, 1, 1], [], []>} : vector<1x80xf32>, vector<80x120xf32>, vector<1x120xf32> -> vector<1x120xf32>
    %101 = arith.addf %96, %100 : vector<1x120xf32>
    %c4_109 = arith.constant 4 : index
    %c0_110 = arith.constant 0 : index
    %102 = vector.load %arg18[%c4_109, %c0_110] : memref<5x80xf32, #tpu.memory_space<vmem>>, vector<1x80xf32>
    %c4_111 = arith.constant 4 : index
    %c0_112 = arith.constant 0 : index
    %c0_113 = arith.constant 0 : index
    %103 = vector.load %arg10[%c4_111, %c0_112, %c0_113] : memref<5x80x120xf32, #tpu.memory_space<vmem>>, vector<1x80x120xf32>
    %104 = vector.shape_cast %103 : vector<1x80x120xf32> to vector<80x120xf32>
    %cst_114 = arith.constant dense<0.000000e+00> : vector<1x120xf32>
    %105 = tpu.matmul %102, %104, %cst_114 {dimension_numbers = #tpu.dot_dimension_numbers<[1], [0], [0], [1], [0, 0, 1, 1], [], []>} : vector<1x80xf32>, vector<80x120xf32>, vector<1x120xf32> -> vector<1x120xf32>
    %106 = arith.addf %101, %105 : vector<1x120xf32>
    %cst_115 = arith.constant 0.000000e+00 : f32
    %107 = vector.broadcast %cst_115 : f32 to vector<1x120xf32>
    %108 = arith.subf %107, %106 : vector<1x120xf32>
    %109 = math.exp %108 : vector<1x120xf32>
    %cst_116 = arith.constant 1.000000e+00 : f32
    %110 = vector.broadcast %cst_116 : f32 to vector<1x120xf32>
    %111 = arith.addf %110, %109 : vector<1x120xf32>
    %112 = tpu.reciprocal %111 : vector<1x120xf32> -> vector<1x120xf32>
    %c0_117 = arith.constant 0 : index
    %c0_118 = arith.constant 0 : index
    %113 = vector.load %arg12[%c0_117, %c0_118] : memref<120x84xf32, #tpu.memory_space<vmem>>, vector<120x84xf32>
    %cst_119 = arith.constant dense<0.000000e+00> : vector<1x84xf32>
    %114 = tpu.matmul %112, %113, %cst_119 {dimension_numbers = #tpu.dot_dimension_numbers<[1], [0], [0], [1], [0, 0, 1, 1], [], []>} : vector<1x120xf32>, vector<120x84xf32>, vector<1x84xf32> -> vector<1x84xf32>
    %c0_120 = arith.constant 0 : index
    %c0_121 = arith.constant 0 : index
    %115 = vector.load %arg13[%c0_120, %c0_121] : memref<1x84xf32, #tpu.memory_space<vmem>>, vector<1x84xf32>
    %116 = arith.addf %114, %115 : vector<1x84xf32>
    %cst_122 = arith.constant 0.000000e+00 : f32
    %117 = vector.broadcast %cst_122 : f32 to vector<1x84xf32>
    %118 = arith.subf %117, %116 : vector<1x84xf32>
    %119 = math.exp %118 : vector<1x84xf32>
    %cst_123 = arith.constant 1.000000e+00 : f32
    %120 = vector.broadcast %cst_123 : f32 to vector<1x84xf32>
    %121 = arith.addf %120, %119 : vector<1x84xf32>
    %122 = tpu.reciprocal %121 : vector<1x84xf32> -> vector<1x84xf32>
    %c0_124 = arith.constant 0 : index
    %c0_125 = arith.constant 0 : index
    %123 = vector.load %arg14[%c0_124, %c0_125] : memref<84x10xf32, #tpu.memory_space<vmem>>, vector<84x10xf32>
    %cst_126 = arith.constant dense<0.000000e+00> : vector<1x10xf32>
    %124 = tpu.matmul %122, %123, %cst_126 {dimension_numbers = #tpu.dot_dimension_numbers<[1], [0], [0], [1], [0, 0, 1, 1], [], []>} : vector<1x84xf32>, vector<84x10xf32>, vector<1x10xf32> -> vector<1x10xf32>
    %c0_127 = arith.constant 0 : index
    %c0_128 = arith.constant 0 : index
    %125 = vector.load %arg15[%c0_127, %c0_128] : memref<1x10xf32, #tpu.memory_space<vmem>>, vector<1x10xf32>
    %126 = arith.addf %124, %125 : vector<1x10xf32>
    %c0_129 = arith.constant 0 : index
    %c0_130 = arith.constant 0 : index
    %c0_131 = arith.constant 0 : index
    %127 = vector.load %arg16[%c0_129, %c0_130, %c0_131] : memref<1x1x10xf32, #tpu.memory_space<vmem>>, vector<1x1x10xf32>
    %128 = vector.shape_cast %127 : vector<1x1x10xf32> to vector<1x10xf32>
    %129 = vector.shape_cast %126 : vector<1x10xf32> to vector<1x1x10xf32>
    tpu.vector_store %arg16[%c0_129, %c0_130, %c0_131], %129 {strides = array<i32>} : memref<1x1x10xf32, #tpu.memory_space<vmem>>, vector<1x1x10xf32>,
    return
  }
  func.func @transform_0(%arg0: i32) -> (i32, i32, i32) {
    %c0_i32 = arith.constant 0 : i32
    %c0_i32_0 = arith.constant 0 : i32
    %c0_i32_1 = arith.constant 0 : i32
    return %arg0, %c0_i32, %c0_i32_0 : i32, i32, i32
  }
  func.func @transform_1(%arg0: i32) -> (i32, i32, i32) {
    %c0_i32 = arith.constant 0 : i32
    %c0_i32_0 = arith.constant 0 : i32
    %c0_i32_1 = arith.constant 0 : i32
    %c0_i32_2 = arith.constant 0 : i32
    return %c0_i32, %c0_i32_0, %c0_i32_1 : i32, i32, i32
  }
  func.func @transform_2(%arg0: i32) -> (i32, i32) {
    %c0_i32 = arith.constant 0 : i32
    %c0_i32_0 = arith.constant 0 : i32
    %c0_i32_1 = arith.constant 0 : i32
    return %c0_i32, %c0_i32_0 : i32, i32
  }
  func.func @transform_3(%arg0: i32) -> (i32, i32) {
    %c0_i32 = arith.constant 0 : i32
    %c0_i32_0 = arith.constant 0 : i32
    %c0_i32_1 = arith.constant 0 : i32
    return %c0_i32, %c0_i32_0 : i32, i32
  }
  func.func @transform_4(%arg0: i32) -> (i32, i32) {
    %c0_i32 = arith.constant 0 : i32
    %c0_i32_0 = arith.constant 0 : i32
    %c0_i32_1 = arith.constant 0 : i32
    return %c0_i32, %c0_i32_0 : i32, i32
  }
  func.func @transform_5(%arg0: i32) -> (i32, i32, i32) {
    %c0_i32 = arith.constant 0 : i32
    %c0_i32_0 = arith.constant 0 : i32
    %c0_i32_1 = arith.constant 0 : i32
    %c0_i32_2 = arith.constant 0 : i32
    return %c0_i32, %c0_i32_0, %c0_i32_1 : i32, i32, i32
  }
  func.func @transform_6(%arg0: i32) -> (i32, i32) {
    %c0_i32 = arith.constant 0 : i32
    %c0_i32_0 = arith.constant 0 : i32
    %c0_i32_1 = arith.constant 0 : i32
    return %c0_i32, %c0_i32_0 : i32, i32
  }
  func.func @transform_7(%arg0: i32) -> (i32, i32) {
    %c0_i32 = arith.constant 0 : i32
    %c0_i32_0 = arith.constant 0 : i32
    %c0_i32_1 = arith.constant 0 : i32
    return %c0_i32, %c0_i32_0 : i32, i32
  }
  func.func @transform_8(%arg0: i32) -> (i32, i32) {
    %c0_i32 = arith.constant 0 : i32
    %c0_i32_0 = arith.constant 0 : i32
    %c0_i32_1 = arith.constant 0 : i32
    return %c0_i32, %c0_i32_0 : i32, i32
  }
  func.func @transform_9(%arg0: i32) -> (i32, i32, i32) {
    %c0_i32 = arith.constant 0 : i32
    %c0_i32_0 = arith.constant 0 : i32
    %c0_i32_1 = arith.constant 0 : i32
    %c0_i32_2 = arith.constant 0 : i32
    return %c0_i32, %c0_i32_0, %c0_i32_1 : i32, i32, i32
  }
  func.func @transform_10(%arg0: i32) -> (i32, i32) {
    %c0_i32 = arith.constant 0 : i32
    %c0_i32_0 = arith.constant 0 : i32
    %c0_i32_1 = arith.constant 0 : i32
    return %c0_i32, %c0_i32_0 : i32, i32
  }
  func.func @transform_11(%arg0: i32) -> (i32, i32) {
    %c0_i32 = arith.constant 0 : i32
    %c0_i32_0 = arith.constant 0 : i32
    %c0_i32_1 = arith.constant 0 : i32
    return %c0_i32, %c0_i32_0 : i32, i32
  }
  func.func @transform_12(%arg0: i32) -> (i32, i32) {
    %c0_i32 = arith.constant 0 : i32
    %c0_i32_0 = arith.constant 0 : i32
    %c0_i32_1 = arith.constant 0 : i32
    return %c0_i32, %c0_i32_0 : i32, i32
  }
  func.func @transform_13(%arg0: i32) -> (i32, i32) {
    %c0_i32 = arith.constant 0 : i32
    %c0_i32_0 = arith.constant 0 : i32
    %c0_i32_1 = arith.constant 0 : i32
    return %c0_i32, %c0_i32_0 : i32, i32
  }
  func.func @transform_14(%arg0: i32) -> (i32, i32) {
    %c0_i32 = arith.constant 0 : i32
    %c0_i32_0 = arith.constant 0 : i32
    %c0_i32_1 = arith.constant 0 : i32
    return %c0_i32, %c0_i32_0 : i32, i32
  }
  func.func @transform_15(%arg0: i32) -> (i32, i32, i32) {
    %c0_i32 = arith.constant 0 : i32
    %c0_i32_0 = arith.constant 0 : i32
    %c0_i32_1 = arith.constant 0 : i32
    return %arg0, %c0_i32, %c0_i32_0 : i32, i32, i32
  }
}

</mosaic_0001>

<llo_original>
// kernel: lenet_forward.1
$region0: #{lenet_forward.1}
  #allocation0 [shape = 'u32[]', space=smem, size = 0x4, offset = 0x4, fixed_abs, tag = 'smem constant byte address 0x4 - core index']
  #allocation1 [shape = 'u32[72,128]{1,0:T(1,128)}', space=vmem, size = 0x9000, scoped, tag = 'internal scratch']
  #allocation2 [shape = 'f32[14,84]{1,0:T(8,128)}', space=vmem, size = 0x2000, scoped, tag = 'scratch operand']
  #allocation3 [shape = 'f32[5,80]{1,0:T(8,128)}', space=vmem, size = 0x1000, scoped, tag = 'scratch operand']
  %s0 = inlined_call_operand.vmem [shape: f32[2,32,32], index: 0, kind: input, shape index: {}]
  %s1 = inlined_call_operand.vmem [shape: f32[5,32,168], index: 1, kind: input, shape index: {}]
  %s2 = inlined_call_operand.vmem [shape: f32[1,168], index: 2, kind: input, shape index: {}]
  %s3 = inlined_call_operand.vmem [shape: f32[14,28], index: 3, kind: input, shape index: {}]
  %s4 = inlined_call_operand.vmem [shape: f32[168,84], index: 4, kind: input, shape index: {}]
  %s5 = inlined_call_operand.vmem [shape: f32[5,84,160], index: 5, kind: input, shape index: {}]
  %s6 = inlined_call_operand.vmem [shape: f32[1,160], index: 6, kind: input, shape index: {}]
  %s7 = inlined_call_operand.vmem [shape: f32[5,10], index: 7, kind: input, shape index: {}]
  %s8 = inlined_call_operand.vmem [shape: f32[160,80], index: 8, kind: input, shape index: {}]
  %s9 = inlined_call_operand.vmem [shape: f32[5,80,120], index: 9, kind: input, shape index: {}]
  %s10 = inlined_call_operand.vmem [shape: f32[1,120], index: 10, kind: input, shape index: {}]
  %s11 = inlined_call_operand.vmem [shape: f32[120,84], index: 11, kind: input, shape index: {}]
  %s12 = inlined_call_operand.vmem [shape: f32[1,84], index: 12, kind: input, shape index: {}]
  %s13 = inlined_call_operand.vmem [shape: f32[84,10], index: 13, kind: input, shape index: {}]
  %s14 = inlined_call_operand.vmem [shape: f32[1,10], index: 14, kind: input, shape index: {}]
  %s15 = inlined_call_operand.hbm [shape: f32[2,1,10], index: 15, kind: output, shape index: {}]
  %s16 = sld [smem:[#allocation0]]
  $region93: #{lenet_forward.1} parent=0
    _
  %s18 = ssub.s32 1, %s16
  %s19 = scalar_select 0, %s18, %s16
  $region1: #{lenet_forward.1} parent=0
    #allocation4 [shape = 'u8[1024]{0}', space=vmem, size = 0x400, scoped, tag = 'output window, operand 0']
    #allocation5 [shape = 's32[2]{0}', space=sflag, size = 0x8, scoped, tag = 'scoped memory for lenet_forward.1']
    %20 = vsyncpa [#allocation5], 0
    %s21 = scalar_lea.sflag [#allocation5], 1
    %22 = vsyncpa %s21, 0
    loop: start=0, step=1, limit=4
    $region2: #{lenet_forward.1} parent=1 // loop_pre_header
      _
    $region3: #{lenet_forward.1} parent=1 // loop_header
      %s24 = sphi 0, %s28
      %p25 = scmp.ge.s32.totalorder %s24, 4
      %s34 = sphi 0, %s36
      %s37 = sphi 0, %s34
      %s38 = sphi 0, %s37
      %s54 = sphi 0, %s38
      %s58 = sphi 0, %s58
      %s60 = sphi 0, %s58
      %s61 = sphi 0, %s60
      %s75 = sphi 0, %s61
      %s79 = sphi 0, %s79
      %s81 = sphi 0, %s79
      %s82 = sphi 0, %s81
      %s96 = sphi 0, %s82
      %s100 = sphi 0, %s100
      %s102 = sphi 0, %s100
      %s103 = sphi 0, %s102
      %s117 = sphi 0, %s103
      %s121 = sphi 0, %s121
      %s123 = sphi 0, %s121
      %s124 = sphi 0, %s123
      %s138 = sphi 0, %s124
      %s142 = sphi 0, %s142
      %s144 = sphi 0, %s142
      %s145 = sphi 0, %s144
      %s159 = sphi 0, %s145
      %s163 = sphi 0, %s163
      %s165 = sphi 0, %s163
      %s166 = sphi 0, %s165
      %s180 = sphi 0, %s166
      %s184 = sphi 0, %s184
      %s186 = sphi 0, %s184
      %s187 = sphi 0, %s186
      %s201 = sphi 0, %s187
      %s205 = sphi 0, %s205
      %s207 = sphi 0, %s205
      %s208 = sphi 0, %s207
      %s222 = sphi 0, %s208
      %s226 = sphi 0, %s226
      %s228 = sphi 0, %s226
      %s229 = sphi 0, %s228
      %s243 = sphi 0, %s229
      %s247 = sphi 0, %s247
      %s249 = sphi 0, %s247
      %s250 = sphi 0, %s249
      %s264 = sphi 0, %s250
      %s268 = sphi 0, %s268
      %s270 = sphi 0, %s268
      %s271 = sphi 0, %s270
      %s285 = sphi 0, %s271
      %s289 = sphi 0, %s289
      %s291 = sphi 0, %s289
      %s292 = sphi 0, %s291
      %s306 = sphi 0, %s292
      %s310 = sphi 0, %s310
      %s312 = sphi 0, %s310
      %s313 = sphi 0, %s312
      %s327 = sphi 0, %s313
      %s331 = sphi 0, %s331
      %s333 = sphi 0, %s331
      %s334 = sphi 0, %s333
      %s348 = sphi 0, %s334
      %s354 = sphi 0, %s356
      %s357 = sphi 0, %s354
      %s358 = sphi 0, %s357
      %s374 = sphi 0, %s358
    $region4: #{lenet_forward.1} parent=1 // loop_header_branch
      %27 = sbr.rel (%p25) target = $region8
    $region5: #{lenet_forward.1} parent=1 // loop_body
      %s29 = ssub.s32 %s24, 1
      %s30 = ssub.s32 %s24, 2
      %s31 = sadd.s32 %s24, 1
      %s32 = ssub.s32 %s24, %s31
      %p33 = scmp.eq.s32.totalorder %s32, 0
      %s35 = sadd.s32 %s34, 1
      %s36 = scalar_select %p33, %s34, %s35
      %p39 = pneg %p33
      %p40 = scmp.eq.s32.totalorder %s24, 1
      %p41 = por %p39, %p40
      %p42 = scmp.ne.s32.totalorder %s34, %s37
      %p43 = scmp.eq.s32.totalorder %s24, 0
      %p44 = por %p42, %p43
      %p45 = scmp.ne.s32.totalorder %s34, %s37
      %p46 = scmp.eq.s32.totalorder %s29, 1
      %p47 = por %p45, %p46
      %p48 = scmp.ne.s32.totalorder %s37, %s38
      %p49 = scmp.eq.s32.totalorder %s29, 0
      %p50 = por %p48, %p49
      %p51 = scmp.ne.s32.totalorder %s37, %s38
      %p52 = scmp.eq.s32.totalorder %s30, 1
      %p53 = por %p51, %p52
      %p55 = scmp.ne.s32.totalorder %s38, %s54
      %p56 = scmp.eq.s32.totalorder %s30, 0
      %p57 = por %p55, %p56
      %s59 = sadd.s32 %s58, 1
      %p62 = scmp.eq.s32.totalorder %s24, 1
      %p63 = scmp.ne.s32.totalorder %s58, %s60
      %p64 = scmp.eq.s32.totalorder %s24, 0
      %p65 = por %p63, %p64
      %p66 = scmp.ne.s32.totalorder %s58, %s60
      %p67 = scmp.eq.s32.totalorder %s29, 1
      %p68 = por %p66, %p67
      %p69 = scmp.ne.s32.totalorder %s60, %s61
      %p70 = scmp.eq.s32.totalorder %s29, 0
      %p71 = por %p69, %p70
      %p72 = scmp.ne.s32.totalorder %s60, %s61
      %p73 = scmp.eq.s32.totalorder %s30, 1
      %p74 = por %p72, %p73
      %p76 = scmp.ne.s32.totalorder %s61, %s75
      %p77 = scmp.eq.s32.totalorder %s30, 0
      %p78 = por %p76, %p77
      %s80 = sadd.s32 %s79, 1
      %p83 = scmp.eq.s32.totalorder %s24, 1
      %p84 = scmp.ne.s32.totalorder %s79, %s81
      %p85 = scmp.eq.s32.totalorder %s24, 0
      %p86 = por %p84, %p85
      %p87 = scmp.ne.s32.totalorder %s79, %s81
      %p88 = scmp.eq.s32.totalorder %s29, 1
      %p89 = por %p87, %p88
      %p90 = scmp.ne.s32.totalorder %s81, %s82
      %p91 = scmp.eq.s32.totalorder %s29, 0
      %p92 = por %p90, %p91
      %p93 = scmp.ne.s32.totalorder %s81, %s82
      %p94 = scmp.eq.s32.totalorder %s30, 1
      %p95 = por %p93, %p94
      %p97 = scmp.ne.s32.totalorder %s82, %s96
      %p98 = scmp.eq.s32.totalorder %s30, 0
      %p99 = por %p97, %p98
      %s101 = sadd.s32 %s100, 1
      %p104 = scmp.eq.s32.totalorder %s24, 1
      %p105 = scmp.ne.s32.totalorder %s100, %s102
      %p106 = scmp.eq.s32.totalorder %s24, 0
      %p107 = por %p105, %p106
      %p108 = scmp.ne.s32.totalorder %s100, %s102
      %p109 = scmp.eq.s32.totalorder %s29, 1
      %p110 = por %p108, %p109
      %p111 = scmp.ne.s32.totalorder %s102, %s103
      %p112 = scmp.eq.s32.totalorder %s29, 0
      %p113 = por %p111, %p112
      %p114 = scmp.ne.s32.totalorder %s102, %s103
      %p115 = scmp.eq.s32.totalorder %s30, 1
      %p116 = por %p114, %p115
      %p118 = scmp.ne.s32.totalorder %s103, %s117
      %p119 = scmp.eq.s32.totalorder %s30, 0
      %p120 = por %p118, %p119
      %s122 = sadd.s32 %s121, 1
      %p125 = scmp.eq.s32.totalorder %s24, 1
      %p126 = scmp.ne.s32.totalorder %s121, %s123
      %p127 = scmp.eq.s32.totalorder %s24, 0
      %p128 = por %p126, %p127
      %p129 = scmp.ne.s32.totalorder %s121, %s123
      %p130 = scmp.eq.s32.totalorder %s29, 1
      %p131 = por %p129, %p130
      %p132 = scmp.ne.s32.totalorder %s123, %s124
      %p133 = scmp.eq.s32.totalorder %s29, 0
      %p134 = por %p132, %p133
      %p135 = scmp.ne.s32.totalorder %s123, %s124
      %p136 = scmp.eq.s32.totalorder %s30, 1
      %p137 = por %p135, %p136
      %p139 = scmp.ne.s32.totalorder %s124, %s138
      %p140 = scmp.eq.s32.totalorder %s30, 0
      %p141 = por %p139, %p140
      %s143 = sadd.s32 %s142, 1
      %p146 = scmp.eq.s32.totalorder %s24, 1
      %p147 = scmp.ne.s32.totalorder %s142, %s144
      %p148 = scmp.eq.s32.totalorder %s24, 0
      %p149 = por %p147, %p148
      %p150 = scmp.ne.s32.totalorder %s142, %s144
      %p151 = scmp.eq.s32.totalorder %s29, 1
      %p152 = por %p150, %p151
      %p153 = scmp.ne.s32.totalorder %s144, %s145
      %p154 = scmp.eq.s32.totalorder %s29, 0
      %p155 = por %p153, %p154
      %p156 = scmp.ne.s32.totalorder %s144, %s145
      %p157 = scmp.eq.s32.totalorder %s30, 1
      %p158 = por %p156, %p157
      %p160 = scmp.ne.s32.totalorder %s145, %s159
      %p161 = scmp.eq.s32.totalorder %s30, 0
      %p162 = por %p160, %p161
      %s164 = sadd.s32 %s163, 1
      %p167 = scmp.eq.s32.totalorder %s24, 1
      %p168 = scmp.ne.s32.totalorder %s163, %s165
      %p169 = scmp.eq.s32.totalorder %s24, 0
      %p170 = por %p168, %p169
      %p171 = scmp.ne.s32.totalorder %s163, %s165
      %p172 = scmp.eq.s32.totalorder %s29, 1
      %p173 = por %p171, %p172
      %p174 = scmp.ne.s32.totalorder %s165, %s166
      %p175 = scmp.eq.s32.totalorder %s29, 0
      %p176 = por %p174, %p175
      %p177 = scmp.ne.s32.totalorder %s165, %s166
      %p178 = scmp.eq.s32.totalorder %s30, 1
      %p179 = por %p177, %p178
      %p181 = scmp.ne.s32.totalorder %s166, %s180
      %p182 = scmp.eq.s32.totalorder %s30, 0
      %p183 = por %p181, %p182
      %s185 = sadd.s32 %s184, 1
      %p188 = scmp.eq.s32.totalorder %s24, 1
      %p189 = scmp.ne.s32.totalorder %s184, %s186
      %p190 = scmp.eq.s32.totalorder %s24, 0
      %p191 = por %p189, %p190
      %p192 = scmp.ne.s32.totalorder %s184, %s186
      %p193 = scmp.eq.s32.totalorder %s29, 1
      %p194 = por %p192, %p193
      %p195 = scmp.ne.s32.totalorder %s186, %s187
      %p196 = scmp.eq.s32.totalorder %s29, 0
      %p197 = por %p195, %p196
      %p198 = scmp.ne.s32.totalorder %s186, %s187
      %p199 = scmp.eq.s32.totalorder %s30, 1
      %p200 = por %p198, %p199
      %p202 = scmp.ne.s32.totalorder %s187, %s201
      %p203 = scmp.eq.s32.totalorder %s30, 0
      %p204 = por %p202, %p203
      %s206 = sadd.s32 %s205, 1
      %p209 = scmp.eq.s32.totalorder %s24, 1
      %p210 = scmp.ne.s32.totalorder %s205, %s207
      %p211 = scmp.eq.s32.totalorder %s24, 0
      %p212 = por %p210, %p211
      %p213 = scmp.ne.s32.totalorder %s205, %s207
      %p214 = scmp.eq.s32.totalorder %s29, 1
      %p215 = por %p213, %p214
      %p216 = scmp.ne.s32.totalorder %s207, %s208
      %p217 = scmp.eq.s32.totalorder %s29, 0
      %p218 = por %p216, %p217
      %p219 = scmp.ne.s32.totalorder %s207, %s208
      %p220 = scmp.eq.s32.totalorder %s30, 1
      %p221 = por %p219, %p220
      %p223 = scmp.ne.s32.totalorder %s208, %s222
      %p224 = scmp.eq.s32.totalorder %s30, 0
      %p225 = por %p223, %p224
      %s227 = sadd.s32 %s226, 1
      %p230 = scmp.eq.s32.totalorder %s24, 1
      %p231 = scmp.ne.s32.totalorder %s226, %s228
      %p232 = scmp.eq.s32.totalorder %s24, 0
      %p233 = por %p231, %p232
      %p234 = scmp.ne.s32.totalorder %s226, %s228
      %p235 = scmp.eq.s32.totalorder %s29, 1
      %p236 = por %p234, %p235
      %p237 = scmp.ne.s32.totalorder %s228, %s229
      %p238 = scmp.eq.s32.totalorder %s29, 0
      %p239 = por %p237, %p238
      %p240 = scmp.ne.s32.totalorder %s228, %s229
      %p241 = scmp.eq.s32.totalorder %s30, 1
      %p242 = por %p240, %p241
      %p244 = scmp.ne.s32.totalorder %s229, %s243
      %p245 = scmp.eq.s32.totalorder %s30, 0
      %p246 = por %p244, %p245
      %s248 = sadd.s32 %s247, 1
      %p251 = scmp.eq.s32.totalorder %s24, 1
      %p252 = scmp.ne.s32.totalorder %s247, %s249
      %p253 = scmp.eq.s32.totalorder %s24, 0
      %p254 = por %p252, %p253
      %p255 = scmp.ne.s32.totalorder %s247, %s249
      %p256 = scmp.eq.s32.totalorder %s29, 1
      %p257 = por %p255, %p256
      %p258 = scmp.ne.s32.totalorder %s249, %s250
      %p259 = scmp.eq.s32.totalorder %s29, 0
      %p260 = por %p258, %p259
      %p261 = scmp.ne.s32.totalorder %s249, %s250
      %p262 = scmp.eq.s32.totalorder %s30, 1
      %p263 = por %p261, %p262
      %p265 = scmp.ne.s32.totalorder %s250, %s264
      %p266 = scmp.eq.s32.totalorder %s30, 0
      %p267 = por %p265, %p266
      %s269 = sadd.s32 %s268, 1
      %p272 = scmp.eq.s32.totalorder %s24, 1
      %p273 = scmp.ne.s32.totalorder %s268, %s270
      %p274 = scmp.eq.s32.totalorder %s24, 0
      %p275 = por %p273, %p274
      %p276 = scmp.ne.s32.totalorder %s268, %s270
      %p277 = scmp.eq.s32.totalorder %s29, 1
      %p278 = por %p276, %p277
      %p279 = scmp.ne.s32.totalorder %s270, %s271
      %p280 = scmp.eq.s32.totalorder %s29, 0
      %p281 = por %p279, %p280
      %p282 = scmp.ne.s32.totalorder %s270, %s271
      %p283 = scmp.eq.s32.totalorder %s30, 1
      %p284 = por %p282, %p283
      %p286 = scmp.ne.s32.totalorder %s271, %s285
      %p287 = scmp.eq.s32.totalorder %s30, 0
      %p288 = por %p286, %p287
      %s290 = sadd.s32 %s289, 1
      %p293 = scmp.eq.s32.totalorder %s24, 1
      %p294 = scmp.ne.s32.totalorder %s289, %s291
      %p295 = scmp.eq.s32.totalorder %s24, 0
      %p296 = por %p294, %p295
      %p297 = scmp.ne.s32.totalorder %s289, %s291
      %p298 = scmp.eq.s32.totalorder %s29, 1
      %p299 = por %p297, %p298
      %p300 = scmp.ne.s32.totalorder %s291, %s292
      %p301 = scmp.eq.s32.totalorder %s29, 0
      %p302 = por %p300, %p301
      %p303 = scmp.ne.s32.totalorder %s291, %s292
      %p304 = scmp.eq.s32.totalorder %s30, 1
      %p305 = por %p303, %p304
      %p307 = scmp.ne.s32.totalorder %s292, %s306
      %p308 = scmp.eq.s32.totalorder %s30, 0
      %p309 = por %p307, %p308
      %s311 = sadd.s32 %s310, 1
      %p314 = scmp.eq.s32.totalorder %s24, 1
      %p315 = scmp.ne.s32.totalorder %s310, %s312
      %p316 = scmp.eq.s32.totalorder %s24, 0
      %p317 = por %p315, %p316
      %p318 = scmp.ne.s32.totalorder %s310, %s312
      %p319 = scmp.eq.s32.totalorder %s29, 1
      %p320 = por %p318, %p319
      %p321 = scmp.ne.s32.totalorder %s312, %s313
      %p322 = scmp.eq.s32.totalorder %s29, 0
      %p323 = por %p321, %p322
      %p324 = scmp.ne.s32.totalorder %s312, %s313
      %p325 = scmp.eq.s32.totalorder %s30, 1
      %p326 = por %p324, %p325
      %p328 = scmp.ne.s32.totalorder %s313, %s327
      %p329 = scmp.eq.s32.totalorder %s30, 0
      %p330 = por %p328, %p329
      %s332 = sadd.s32 %s331, 1
      %p335 = scmp.eq.s32.totalorder %s24, 1
      %p336 = scmp.ne.s32.totalorder %s331, %s333
      %p337 = scmp.eq.s32.totalorder %s24, 0
      %p338 = por %p336, %p337
      %p339 = scmp.ne.s32.totalorder %s331, %s333
      %p340 = scmp.eq.s32.totalorder %s29, 1
      %p341 = por %p339, %p340
      %p342 = scmp.ne.s32.totalorder %s333, %s334
      %p343 = scmp.eq.s32.totalorder %s29, 0
      %p344 = por %p342, %p343
      %p345 = scmp.ne.s32.totalorder %s333, %s334
      %p346 = scmp.eq.s32.totalorder %s30, 1
      %p347 = por %p345, %p346
      %p349 = scmp.ne.s32.totalorder %s334, %s348
      %p350 = scmp.eq.s32.totalorder %s30, 0
      %p351 = por %p349, %p350
      %s352 = ssub.s32 %s24, %s31
      %p353 = scmp.eq.s32.totalorder %s352, 0
      %s355 = sadd.s32 %s354, 1
      %s356 = scalar_select %p353, %s354, %s355
      %p359 = pneg %p353
      %p360 = scmp.eq.s32.totalorder %s24, 1
      %p361 = por %p359, %p360
      %p362 = scmp.ne.s32.totalorder %s354, %s357
      %p363 = scmp.eq.s32.totalorder %s24, 0
      %p364 = por %p362, %p363
      %p365 = scmp.ne.s32.totalorder %s354, %s357
      %p366 = scmp.eq.s32.totalorder %s29, 1
      %p367 = por %p365, %p366
      %p368 = scmp.ne.s32.totalorder %s357, %s358
      %p369 = scmp.eq.s32.totalorder %s29, 0
      %p370 = por %p368, %p369
      %p371 = scmp.ne.s32.totalorder %s357, %s358
      %p372 = scmp.eq.s32.totalorder %s30, 1
      %p373 = por %p371, %p372
      %p375 = scmp.ne.s32.totalorder %s358, %s374
      %p376 = scmp.eq.s32.totalorder %s30, 0
      %p377 = por %p375, %p376
      %p378 = scmp.le.s32.totalorder 1, %s24
      %p379 = scmp.lt.s32.totalorder %s24, 3
      %p380 = pnand %p378, %p379
      %p381 = pneg %p380
      // Predicated region
      $region9: #{lenet_forward.1} parent=5 // pred_check
        _
      $region10: #{lenet_forward.1} parent=5 // pred_check_branch
        %383 = sbr.rel (%p380) target = $region12
      $region11: #{lenet_forward.1} parent=5 // pred_region
        %s384 = ssub.s32 %s24, 1
        // Predicated region
        $region13: #{lenet_forward.1} parent=11 // pred_check
          %p385 = pneg %p71
        $region14: #{lenet_forward.1} parent=11 // pred_check_branch
          %387 = sbr.rel (%p385) target = $region16
        $region15: #{lenet_forward.1} parent=11 // pred_region
          _
        $region16: #{lenet_forward.1} parent=11 // pred_fallthru
          _
        // Predicated region
        $region17: #{lenet_forward.1} parent=11 // pred_check
          %p388 = pneg %p92
        $region18: #{lenet_forward.1} parent=11 // pred_check_branch
          %390 = sbr.rel (%p388) target = $region20
        $region19: #{lenet_forward.1} parent=11 // pred_region
          _
        $region20: #{lenet_forward.1} parent=11 // pred_fallthru
          _
        // Predicated region
        $region21: #{lenet_forward.1} parent=11 // pred_check
          %p391 = pneg %p113
        $region22: #{lenet_forward.1} parent=11 // pred_check_branch
          %393 = sbr.rel (%p391) target = $region24
        $region23: #{lenet_forward.1} parent=11 // pred_region
          _
        $region24: #{lenet_forward.1} parent=11 // pred_fallthru
          _
        // Predicated region
        $region25: #{lenet_forward.1} parent=11 // pred_check
          %p394 = pneg %p134
        $region26: #{lenet_forward.1} parent=11 // pred_check_branch
          %396 = sbr.rel (%p394) target = $region28
        $region27: #{lenet_forward.1} parent=11 // pred_region
          _
        $region28: #{lenet_forward.1} parent=11 // pred_fallthru
          _
        // Predicated region
        $region29: #{lenet_forward.1} parent=11 // pred_check
          %p397 = pneg %p155
        $region30: #{lenet_forward.1} parent=11 // pred_check_branch
          %399 = sbr.rel (%p397) target = $region32
        $region31: #{lenet_forward.1} parent=11 // pred_region
          _
        $region32: #{lenet_forward.1} parent=11 // pred_fallthru
          _
        // Predicated region
        $region33: #{lenet_forward.1} parent=11 // pred_check
          %p400 = pneg %p176
        $region34: #{lenet_forward.1} parent=11 // pred_check_branch
          %402 = sbr.rel (%p400) target = $region36
        $region35: #{lenet_forward.1} parent=11 // pred_region
          _
        $region36: #{lenet_forward.1} parent=11 // pred_fallthru
          _
        // Predicated region
        $region37: #{lenet_forward.1} parent=11 // pred_check
          %p403 = pneg %p197
        $region38: #{lenet_forward.1} parent=11 // pred_check_branch
          %405 = sbr.rel (%p403) target = $region40
        $region39: #{lenet_forward.1} parent=11 // pred_region
          _
        $region40: #{lenet_forward.1} parent=11 // pred_fallthru
          _
        // Predicated region
        $region41: #{lenet_forward.1} parent=11 // pred_check
          %p406 = pneg %p218
        $region42: #{lenet_forward.1} parent=11 // pred_check_branch
          %408 = sbr.rel (%p406) target = $region44
        $region43: #{lenet_forward.1} parent=11 // pred_region
          _
        $region44: #{lenet_forward.1} parent=11 // pred_fallthru
          _
        // Predicated region
        $region45: #{lenet_forward.1} parent=11 // pred_check
          %p409 = pneg %p239
        $region46: #{lenet_forward.1} parent=11 // pred_check_branch
          %411 = sbr.rel (%p409) target = $region48
        $region47: #{lenet_forward.1} parent=11 // pred_region
          _
        $region48: #{lenet_forward.1} parent=11 // pred_fallthru
          _
        // Predicated region
        $region49: #{lenet_forward.1} parent=11 // pred_check
          %p412 = pneg %p260
        $region50: #{lenet_forward.1} parent=11 // pred_check_branch
          %414 = sbr.rel (%p412) target = $region52
        $region51: #{lenet_forward.1} parent=11 // pred_region
          _
        $region52: #{lenet_forward.1} parent=11 // pred_fallthru
          _
        // Predicated region
        $region53: #{lenet_forward.1} parent=11 // pred_check
          %p415 = pneg %p281
        $region54: #{lenet_forward.1} parent=11 // pred_check_branch
          %417 = sbr.rel (%p415) target = $region56
        $region55: #{lenet_forward.1} parent=11 // pred_region
          _
        $region56: #{lenet_forward.1} parent=11 // pred_fallthru
          _
        // Predicated region
        $region57: #{lenet_forward.1} parent=11 // pred_check
          %p418 = pneg %p302
        $region58: #{lenet_forward.1} parent=11 // pred_check_branch
          %420 = sbr.rel (%p418) target = $region60
        $region59: #{lenet_forward.1} parent=11 // pred_region
          _
        $region60: #{lenet_forward.1} parent=11 // pred_fallthru
          _
        // Predicated region
        $region61: #{lenet_forward.1} parent=11 // pred_check
          %p421 = pneg %p323
        $region62: #{lenet_forward.1} parent=11 // pred_check_branch
          %423 = sbr.rel (%p421) target = $region64
        $region63: #{lenet_forward.1} parent=11 // pred_region
          _
        $region64: #{lenet_forward.1} parent=11 // pred_fallthru
          _
        // Predicated region
        $region65: #{lenet_forward.1} parent=11 // pred_check
          %p424 = pneg %p344
        $region66: #{lenet_forward.1} parent=11 // pred_check_branch
          %426 = sbr.rel (%p424) target = $region68
        $region67: #{lenet_forward.1} parent=11 // pred_region
          _
        $region68: #{lenet_forward.1} parent=11 // pred_fallthru
          _
      $region12: #{lenet_forward.1} parent=5 // pred_fallthru
        _
      %p427 = scmp.lt.s32.totalorder %s24, 2
      // Predicated region
      $region69: #{lenet_forward.1} parent=5 // pred_check
        %p428 = pneg %p427
      $region70: #{lenet_forward.1} parent=5 // pred_check_branch
        %430 = sbr.rel (%p428) target = $region72
      $region71: #{lenet_forward.1} parent=5 // pred_region
        // Predicated region
        $region73: #{lenet_forward.1} parent=71 // pred_check
          %p431 = pneg %p44
        $region74: #{lenet_forward.1} parent=71 // pred_check_branch
          %433 = sbr.rel (%p431) target = $region76
        $region75: #{lenet_forward.1} parent=71 // pred_region
          %p434 = scmp.lt.s32.totalorder %s24, 1
          %s435 = scalar_select %p434, %s24, 1
          %s436 = smul.addr %s435, 4
          %s437 = smul.addr %s436, 8
          %s438 = scalar_lea.vmem %s0, %s437
        $region76: #{lenet_forward.1} parent=71 // pred_fallthru
          _
      $region72: #{lenet_forward.1} parent=5 // pred_fallthru
        _
      %p439 = scmp.le.s32.totalorder 1, %s24
      %p440 = scmp.lt.s32.totalorder %s24, 3
      %p441 = pnand %p439, %p440
      %p442 = pneg %p441
      // Predicated region
      $region77: #{lenet_forward.1} parent=5 // pred_check
        _
      $region78: #{lenet_forward.1} parent=5 // pred_check_branch
        %444 = sbr.rel (%p441) target = $region80
      $region79: #{lenet_forward.1} parent=5 // pred_region
        %s445 = ssub.s32 %s24, 1
        %p446 = scmp.lt.s32.totalorder %s29, 1
        %s447 = scalar_select %p446, %s29, 1
        %s448 = smul.addr %s447, 4
        %s449 = smul.addr %s448, 8
        %s450 = scalar_lea.vmem %s0, %s449
        %p451 = pneg %p50
        %p452 = pneg %p47
        %p453 = pneg %p71
        %p454 = pneg %p68
        %p455 = pneg %p92
        %p456 = pneg %p89
        %p457 = pneg %p113
        %p458 = pneg %p110
        %p459 = pneg %p134
        %p460 = pneg %p131
        %p461 = pneg %p155
        %p462 = pneg %p152
        %p463 = pneg %p176
        %p464 = pneg %p173
        %p465 = pneg %p197
        %p466 = pneg %p194
        %p467 = pneg %p218
        %p468 = pneg %p215
        %p469 = pneg %p239
        %p470 = pneg %p236
        %p471 = pneg %p260
        %p472 = pneg %p257
        %p473 = pneg %p281
        %p474 = pneg %p278
        %p475 = pneg %p302
        %p476 = pneg %p299
        %p477 = pneg %p323
        %p478 = pneg %p320
        %p479 = pneg %p344
        %p480 = pneg %p341
        %p481 = pneg %p370
        %p482 = pneg %p367
        %s483 = sand.u32 %s357, 1
        %s484 = scalar_lea.sflag [#allocation5], %s483
        %s485 = sand.u32 %s357, 1
        %s486 = scalar_lea.vmem [#allocation4], %s485
        %p487 = scmp.lt.s32.totalorder %s29, 1
        %s488 = scalar_select %p487, %s29, 1
        %s489 = smul.addr %s488, 4
        %s490 = smul.addr %s489, 8
        %s491 = scalar_lea.vmem %s0, %s490
        %v492 = vld [vmem:[%s491] sm:$0xff]
        %v493 = vld [vmem:[%s491 + $0x8] sm:$0xff]
        %v494 = vld [vmem:[%s491 + $0x10] sm:$0xff]
        %v495 = vld [vmem:[%s491 + $0x18] sm:$0xf]
        %v496 = vld [vmem:[%s1] sm:$0xff]
        %v497 = vld [vmem:[%s1 + $0x8] sm:$0xff]
        %v498 = vld [vmem:[%s1 + $0x10] sm:$0xff]
        %v499 = vld [vmem:[%s1 + $0x18] sm:$0xff]
        %v500 = vld [vmem:[%s1 + $0x20] sm:$0xff]
        %v501 = vld [vmem:[%s1 + $0x28] sm:$0xff]
        %v502 = vld [vmem:[%s1 + $0x30] sm:$0xff]
        %v503 = vld [vmem:[%s1 + $0x38] sm:$0xff]
        %v504 = vld [vmem:[%s491 + $0x1] sm:$0xff]
        %v505 = vld [vmem:[%s491 + $0x9] sm:$0xff]
        %v506 = vld [vmem:[%s491 + $0x11] sm:$0xff]
        %v507 = vld [vmem:[%s491 + $0x19] sm:$0xf]
        %s508 = scalar_lea.vmem %s1, 64
        %v509 = vld [vmem:[%s508] sm:$0xff]
        %v510 = vld [vmem:[%s508 + $0x8] sm:$0xff]
        %v511 = vld [vmem:[%s508 + $0x10] sm:$0xff]
        %v512 = vld [vmem:[%s508 + $0x18] sm:$0xff]
        %v513 = vld [vmem:[%s508 + $0x20] sm:$0xff]
        %v514 = vld [vmem:[%s508 + $0x28] sm:$0xff]
        %v515 = vld [vmem:[%s508 + $0x30] sm:$0xff]
        %v516 = vld [vmem:[%s508 + $0x38] sm:$0xff]
        %vm517 = vcmask 261120
        %v519 = vsel %vm517, %v504, 0
        %v522 = vsel %vm517, %v505, 0
        %v525 = vsel %vm517, %v506, 0
        %v528 = vsel %vm517, %v507, 0
        %530 = vmatpush.msra.mxu0 0.0
        %531 = vmatpush.msra.mxu0 0.0
        %532 = vmatpush.msra.mxu0 0.0
        %533 = vmatpush.msra.mxu0 0.0
        %534 = vmatpush.msra.mxu0 0.0
        %535 = vmatpush.msra.mxu0 0.0
        %536 = vmatpush.msra.mxu0 0.0
        %537 = vmatpush.msra.mxu0 0.0
        %538 = vmatpush.msra.mxu0 0.0
        %539 = vmatpush.msra.mxu0 0.0
        %540 = vmatpush.msra.mxu0 0.0
        %541 = vmatpush.msra.mxu0 0.0
        %542 = vmatpush.msra.mxu0 %v515
        %543 = vmatpush.msra.mxu0 %v513
        %544 = vmatpush.msra.mxu0 %v511
        %545 = vmatpush.msra.mxu0 %v509
        %546 = vmatmul.f32.gmra.mxu0 %v519
        %v547 = vpop.f32.mrf.mxu0
        %v548 = vadd.f32 0.0, %v547
        %549 = vmatmul.f32.gmra.mxu0 %v522
        %v550 = vpop.f32.mrf.mxu0
        %v551 = vadd.f32 0.0, %v550
        %552 = vmatmul.f32.gmra.mxu0 %v525
        %v553 = vpop.f32.mrf.mxu0
        %v554 = vadd.f32 0.0, %v553
        %555 = vmatmul.f32.gmra.mxu0 %v528
        %v556 = vpop.f32.mrf.mxu0
        %v557 = vadd.f32 0.0, %v556
        %558 = vdwg.mxu0
        %559 = vmatpush.msra.mxu0 0.0
        %560 = vmatpush.msra.mxu0 0.0
        %561 = vmatpush.msra.mxu0 0.0
        %562 = vmatpush.msra.mxu0 0.0
        %563 = vmatpush.msra.mxu0 0.0
        %564 = vmatpush.msra.mxu0 0.0
        %565 = vmatpush.msra.mxu0 0.0
        %566 = vmatpush.msra.mxu0 0.0
        %567 = vmatpush.msra.mxu0 0.0
        %568 = vmatpush.msra.mxu0 0.0
        %569 = vmatpush.msra.mxu0 0.0
        %570 = vmatpush.msra.mxu0 0.0
        %571 = vmatpush.msra.mxu0 %v516
        %572 = vmatpush.msra.mxu0 %v514
        %573 = vmatpush.msra.mxu0 %v512
        %574 = vmatpush.msra.mxu0 %v510
        %575 = vmatmul.f32.gmra.mxu0 %v519
        %v576 = vpop.f32.mrf.mxu0
        %v577 = vadd.f32 0.0, %v576
        %578 = vmatmul.f32.gmra.mxu0 %v522
        %v579 = vpop.f32.mrf.mxu0
        %v580 = vadd.f32 0.0, %v579
        %581 = vmatmul.f32.gmra.mxu0 %v525
        %v582 = vpop.f32.mrf.mxu0
        %v583 = vadd.f32 0.0, %v582
        %584 = vmatmul.f32.gmra.mxu0 %v528
        %v585 = vpop.f32.mrf.mxu0
        %v586 = vadd.f32 0.0, %v585
        %587 = vdwg.mxu0
        %v589 = vsel %vm517, %v492, 0
        %v592 = vsel %vm517, %v493, 0
        %v595 = vsel %vm517, %v494, 0
        %v598 = vsel %vm517, %v495, 0
        %600 = vmatpush.msra.mxu0 0.0
        %601 = vmatpush.msra.mxu0 0.0
        %602 = vmatpush.msra.mxu0 0.0
        %603 = vmatpush.msra.mxu0 0.0
        %604 = vmatpush.msra.mxu0 0.0
        %605 = vmatpush.msra.mxu0 0.0
        %606 = vmatpush.msra.mxu0 0.0
        %607 = vmatpush.msra.mxu0 0.0
        %608 = vmatpush.msra.mxu0 0.0
        %609 = vmatpush.msra.mxu0 0.0
        %610 = vmatpush.msra.mxu0 0.0
        %611 = vmatpush.msra.mxu0 0.0
        %612 = vmatpush.msra.mxu0 %v502
        %613 = vmatpush.msra.mxu0 %v500
        %614 = vmatpush.msra.mxu0 %v498
        %615 = vmatpush.msra.mxu0 %v496
        %616 = vmatmul.f32.gmra.mxu0 %v589
        %v617 = vpop.f32.mrf.mxu0
        %v618 = vadd.f32 %v548, %v617
        %619 = vmatmul.f32.gmra.mxu0 %v592
        %v620 = vpop.f32.mrf.mxu0
        %v621 = vadd.f32 %v551, %v620
        %622 = vmatmul.f32.gmra.mxu0 %v595
        %v623 = vpop.f32.mrf.mxu0
        %v624 = vadd.f32 %v554, %v623
        %625 = vmatmul.f32.gmra.mxu0 %v598
        %v626 = vpop.f32.mrf.mxu0
        %v627 = vadd.f32 %v557, %v626
        %628 = vdwg.mxu0
        %629 = vmatpush.msra.mxu0 0.0
        %630 = vmatpush.msra.mxu0 0.0
        %631 = vmatpush.msra.mxu0 0.0
        %632 = vmatpush.msra.mxu0 0.0
        %633 = vmatpush.msra.mxu0 0.0
        %634 = vmatpush.msra.mxu0 0.0
        %635 = vmatpush.msra.mxu0 0.0
        %636 = vmatpush.msra.mxu0 0.0
        %637 = vmatpush.msra.mxu0 0.0
        %638 = vmatpush.msra.mxu0 0.0
        %639 = vmatpush.msra.mxu0 0.0
        %640 = vmatpush.msra.mxu0 0.0
        %641 = vmatpush.msra.mxu0 %v503
        %642 = vmatpush.msra.mxu0 %v501
        %643 = vmatpush.msra.mxu0 %v499
        %644 = vmatpush.msra.mxu0 %v497
        %645 = vmatmul.f32.gmra.mxu0 %v589
        %v646 = vpop.f32.mrf.mxu0
        %v647 = vadd.f32 %v577, %v646
        %648 = vmatmul.f32.gmra.mxu0 %v592
        %v649 = vpop.f32.mrf.mxu0
        %v650 = vadd.f32 %v580, %v649
        %651 = vmatmul.f32.gmra.mxu0 %v595
        %v652 = vpop.f32.mrf.mxu0
        %v653 = vadd.f32 %v583, %v652
        %654 = vmatmul.f32.gmra.mxu0 %v598
        %v655 = vpop.f32.mrf.mxu0
        %v656 = vadd.f32 %v586, %v655
        %657 = vdwg.mxu0
        %v658 = vld [vmem:[%s491 + $0x2] sm:$0xff]
        %v659 = vld [vmem:[%s491 + $0xa] sm:$0xff]
        %v660 = vld [vmem:[%s491 + $0x12] sm:$0xff]
        %v661 = vld [vmem:[%s491 + $0x1a] sm:$0xf]
        %s662 = scalar_lea.vmem %s1, 128
        %v663 = vld [vmem:[%s662] sm:$0xff]
        %v664 = vld [vmem:[%s662 + $0x8] sm:$0xff]
        %v665 = vld [vmem:[%s662 + $0x10] sm:$0xff]
        %v666 = vld [vmem:[%s662 + $0x18] sm:$0xff]
        %v667 = vld [vmem:[%s662 + $0x20] sm:$0xff]
        %v668 = vld [vmem:[%s662 + $0x28] sm:$0xff]
        %v669 = vld [vmem:[%s662 + $0x30] sm:$0xff]
        %v670 = vld [vmem:[%s662 + $0x38] sm:$0xff]
        %v672 = vsel %vm517, %v658, 0
        %v675 = vsel %vm517, %v659, 0
        %v678 = vsel %vm517, %v660, 0
        %v681 = vsel %vm517, %v661, 0
        %683 = vmatpush.msra.mxu0 0.0
        %684 = vmatpush.msra.mxu0 0.0
        %685 = vmatpush.msra.mxu0 0.0
        %686 = vmatpush.msra.mxu0 0.0
        %687 = vmatpush.msra.mxu0 0.0
        %688 = vmatpush.msra.mxu0 0.0
        %689 = vmatpush.msra.mxu0 0.0
        %690 = vmatpush.msra.mxu0 0.0
        %691 = vmatpush.msra.mxu0 0.0
        %692 = vmatpush.msra.mxu0 0.0
        %693 = vmatpush.msra.mxu0 0.0
        %694 = vmatpush.msra.mxu0 0.0
        %695 = vmatpush.msra.mxu0 %v669
        %696 = vmatpush.msra.mxu0 %v667
        %697 = vmatpush.msra.mxu0 %v665
        %698 = vmatpush.msra.mxu0 %v663
        %699 = vmatmul.f32.gmra.mxu0 %v672
        %v700 = vpop.f32.mrf.mxu0
        %v701 = vadd.f32 0.0, %v700
        %702 = vmatmul.f32.gmra.mxu0 %v675
        %v703 = vpop.f32.mrf.mxu0
        %v704 = vadd.f32 0.0, %v703
        %705 = vmatmul.f32.gmra.mxu0 %v678
        %v706 = vpop.f32.mrf.mxu0
        %v707 = vadd.f32 0.0, %v706
        %708 = vmatmul.f32.gmra.mxu0 %v681
        %v709 = vpop.f32.mrf.mxu0
        %v710 = vadd.f32 0.0, %v709
        %711 = vdwg.mxu0
        %712 = vmatpush.msra.mxu0 0.0
        %713 = vmatpush.msra.mxu0 0.0
        %714 = vmatpush.msra.mxu0 0.0
        %715 = vmatpush.msra.mxu0 0.0
        %716 = vmatpush.msra.mxu0 0.0
        %717 = vmatpush.msra.mxu0 0.0
        %718 = vmatpush.msra.mxu0 0.0
        %719 = vmatpush.msra.mxu0 0.0
        %720 = vmatpush.msra.mxu0 0.0
        %721 = vmatpush.msra.mxu0 0.0
        %722 = vmatpush.msra.mxu0 0.0
        %723 = vmatpush.msra.mxu0 0.0
        %724 = vmatpush.msra.mxu0 %v670
        %725 = vmatpush.msra.mxu0 %v668
        %726 = vmatpush.msra.mxu0 %v666
        %727 = vmatpush.msra.mxu0 %v664
        %728 = vmatmul.f32.gmra.mxu0 %v672
        %v729 = vpop.f32.mrf.mxu0
        %v730 = vadd.f32 0.0, %v729
        %731 = vmatmul.f32.gmra.mxu0 %v675
        %v732 = vpop.f32.mrf.mxu0
        %v733 = vadd.f32 0.0, %v732
        %734 = vmatmul.f32.gmra.mxu0 %v678
        %v735 = vpop.f32.mrf.mxu0
        %v736 = vadd.f32 0.0, %v735
        %737 = vmatmul.f32.gmra.mxu0 %v681
        %v738 = vpop.f32.mrf.mxu0
        %v739 = vadd.f32 0.0, %v738
        %740 = vdwg.mxu0
        %v741 = vadd.f32 %v618, %v701
        %v742 = vadd.f32 %v647, %v730
        %v743 = vadd.f32 %v621, %v704
        %v744 = vadd.f32 %v650, %v733
        %v745 = vadd.f32 %v624, %v707
        %v746 = vadd.f32 %v653, %v736
        %v747 = vadd.f32 %v627, %v710
        %v748 = vadd.f32 %v656, %v739
        %v749 = vld [vmem:[%s491 + $0x3] sm:$0xff]
        %v750 = vld [vmem:[%s491 + $0xb] sm:$0xff]
        %v751 = vld [vmem:[%s491 + $0x13] sm:$0xff]
        %v752 = vld [vmem:[%s491 + $0x1b] sm:$0xf]
        %s753 = scalar_lea.vmem %s1, 192
        %v754 = vld [vmem:[%s753] sm:$0xff]
        %v755 = vld [vmem:[%s753 + $0x8] sm:$0xff]
        %v756 = vld [vmem:[%s753 + $0x10] sm:$0xff]
        %v757 = vld [vmem:[%s753 + $0x18] sm:$0xff]
        %v758 = vld [vmem:[%s753 + $0x20] sm:$0xff]
        %v759 = vld [vmem:[%s753 + $0x28] sm:$0xff]
        %v760 = vld [vmem:[%s753 + $0x30] sm:$0xff]
        %v761 = vld [vmem:[%s753 + $0x38] sm:$0xff]
        %v763 = vsel %vm517, %v749, 0
        %v766 = vsel %vm517, %v750, 0
        %v769 = vsel %vm517, %v751, 0
        %v772 = vsel %vm517, %v752, 0
        %774 = vmatpush.msra.mxu0 0.0
        %775 = vmatpush.msra.mxu0 0.0
        %776 = vmatpush.msra.mxu0 0.0
        %777 = vmatpush.msra.mxu0 0.0
        %778 = vmatpush.msra.mxu0 0.0
        %779 = vmatpush.msra.mxu0 0.0
        %780 = vmatpush.msra.mxu0 0.0
        %781 = vmatpush.msra.mxu0 0.0
        %782 = vmatpush.msra.mxu0 0.0
        %783 = vmatpush.msra.mxu0 0.0
        %784 = vmatpush.msra.mxu0 0.0
        %785 = vmatpush.msra.mxu0 0.0
        %786 = vmatpush.msra.mxu0 %v760
        %787 = vmatpush.msra.mxu0 %v758
        %788 = vmatpush.msra.mxu0 %v756
        %789 = vmatpush.msra.mxu0 %v754
        %790 = vmatmul.f32.gmra.mxu0 %v763
        %v791 = vpop.f32.mrf.mxu0
        %v792 = vadd.f32 0.0, %v791
        %793 = vmatmul.f32.gmra.mxu0 %v766
        %v794 = vpop.f32.mrf.mxu0
        %v795 = vadd.f32 0.0, %v794
        %796 = vmatmul.f32.gmra.mxu0 %v769
        %v797 = vpop.f32.mrf.mxu0
        %v798 = vadd.f32 0.0, %v797
        %799 = vmatmul.f32.gmra.mxu0 %v772
        %v800 = vpop.f32.mrf.mxu0
        %v801 = vadd.f32 0.0, %v800
        %802 = vdwg.mxu0
        %803 = vmatpush.msra.mxu0 0.0
        %804 = vmatpush.msra.mxu0 0.0
        %805 = vmatpush.msra.mxu0 0.0
        %806 = vmatpush.msra.mxu0 0.0
        %807 = vmatpush.msra.mxu0 0.0
        %808 = vmatpush.msra.mxu0 0.0
        %809 = vmatpush.msra.mxu0 0.0
        %810 = vmatpush.msra.mxu0 0.0
        %811 = vmatpush.msra.mxu0 0.0
        %812 = vmatpush.msra.mxu0 0.0
        %813 = vmatpush.msra.mxu0 0.0
        %814 = vmatpush.msra.mxu0 0.0
        %815 = vmatpush.msra.mxu0 %v761
        %816 = vmatpush.msra.mxu0 %v759
        %817 = vmatpush.msra.mxu0 %v757
        %818 = vmatpush.msra.mxu0 %v755
        %819 = vmatmul.f32.gmra.mxu0 %v763
        %v820 = vpop.f32.mrf.mxu0
        %v821 = vadd.f32 0.0, %v820
        %822 = vmatmul.f32.gmra.mxu0 %v766
        %v823 = vpop.f32.mrf.mxu0
        %v824 = vadd.f32 0.0, %v823
        %825 = vmatmul.f32.gmra.mxu0 %v769
        %v826 = vpop.f32.mrf.mxu0
        %v827 = vadd.f32 0.0, %v826
        %828 = vmatmul.f32.gmra.mxu0 %v772
        %v829 = vpop.f32.mrf.mxu0
        %v830 = vadd.f32 0.0, %v829
        %831 = vdwg.mxu0
        %v832 = vadd.f32 %v741, %v792
        %v833 = vadd.f32 %v742, %v821
        %v834 = vadd.f32 %v743, %v795
        %v835 = vadd.f32 %v744, %v824
        %v836 = vadd.f32 %v745, %v798
        %v837 = vadd.f32 %v746, %v827
        %v838 = vadd.f32 %v747, %v801
        %v839 = vadd.f32 %v748, %v830
        %v840 = vld [vmem:[%s491 + $0x4] sm:$0xff]
        %v841 = vld [vmem:[%s491 + $0xc] sm:$0xff]
        %v842 = vld [vmem:[%s491 + $0x14] sm:$0xff]
        %v843 = vld [vmem:[%s491 + $0x1c] sm:$0xf]
        %s844 = scalar_lea.vmem %s1, 256
        %v845 = vld [vmem:[%s844] sm:$0xff]
        %v846 = vld [vmem:[%s844 + $0x8] sm:$0xff]
        %v847 = vld [vmem:[%s844 + $0x10] sm:$0xff]
        %v848 = vld [vmem:[%s844 + $0x18] sm:$0xff]
        %v849 = vld [vmem:[%s844 + $0x20] sm:$0xff]
        %v850 = vld [vmem:[%s844 + $0x28] sm:$0xff]
        %v851 = vld [vmem:[%s844 + $0x30] sm:$0xff]
        %v852 = vld [vmem:[%s844 + $0x38] sm:$0xff]
        %v854 = vsel %vm517, %v840, 0
        %v857 = vsel %vm517, %v841, 0
        %v860 = vsel %vm517, %v842, 0
        %v863 = vsel %vm517, %v843, 0
        %865 = vmatpush.msra.mxu0 0.0
        %866 = vmatpush.msra.mxu0 0.0
        %867 = vmatpush.msra.mxu0 0.0
        %868 = vmatpush.msra.mxu0 0.0
        %869 = vmatpush.msra.mxu0 0.0
        %870 = vmatpush.msra.mxu0 0.0
        %871 = vmatpush.msra.mxu0 0.0
        %872 = vmatpush.msra.mxu0 0.0
        %873 = vmatpush.msra.mxu0 0.0
        %874 = vmatpush.msra.mxu0 0.0
        %875 = vmatpush.msra.mxu0 0.0
        %876 = vmatpush.msra.mxu0 0.0
        %877 = vmatpush.msra.mxu0 %v851
        %878 = vmatpush.msra.mxu0 %v849
        %879 = vmatpush.msra.mxu0 %v847
        %880 = vmatpush.msra.mxu0 %v845
        %881 = vmatmul.f32.gmra.mxu0 %v854
        %v882 = vpop.f32.mrf.mxu0
        %v883 = vadd.f32 0.0, %v882
        %884 = vmatmul.f32.gmra.mxu0 %v857
        %v885 = vpop.f32.mrf.mxu0
        %v886 = vadd.f32 0.0, %v885
        %887 = vmatmul.f32.gmra.mxu0 %v860
        %v888 = vpop.f32.mrf.mxu0
        %v889 = vadd.f32 0.0, %v888
        %890 = vmatmul.f32.gmra.mxu0 %v863
        %v891 = vpop.f32.mrf.mxu0
        %v892 = vadd.f32 0.0, %v891
        %893 = vdwg.mxu0
        %894 = vmatpush.msra.mxu0 0.0
        %895 = vmatpush.msra.mxu0 0.0
        %896 = vmatpush.msra.mxu0 0.0
        %897 = vmatpush.msra.mxu0 0.0
        %898 = vmatpush.msra.mxu0 0.0
        %899 = vmatpush.msra.mxu0 0.0
        %900 = vmatpush.msra.mxu0 0.0
        %901 = vmatpush.msra.mxu0 0.0
        %902 = vmatpush.msra.mxu0 0.0
        %903 = vmatpush.msra.mxu0 0.0
        %904 = vmatpush.msra.mxu0 0.0
        %905 = vmatpush.msra.mxu0 0.0
        %906 = vmatpush.msra.mxu0 %v852
        %907 = vmatpush.msra.mxu0 %v850
        %908 = vmatpush.msra.mxu0 %v848
        %909 = vmatpush.msra.mxu0 %v846
        %910 = vmatmul.f32.gmra.mxu0 %v854
        %v911 = vpop.f32.mrf.mxu0
        %v912 = vadd.f32 0.0, %v911
        %913 = vmatmul.f32.gmra.mxu0 %v857
        %v914 = vpop.f32.mrf.mxu0
        %v915 = vadd.f32 0.0, %v914
        %916 = vmatmul.f32.gmra.mxu0 %v860
        %v917 = vpop.f32.mrf.mxu0
        %v918 = vadd.f32 0.0, %v917
        %919 = vmatmul.f32.gmra.mxu0 %v863
        %v920 = vpop.f32.mrf.mxu0
        %v921 = vadd.f32 0.0, %v920
        %922 = vdwg.mxu0
        %v923 = vadd.f32 %v832, %v883
        %v924 = vadd.f32 %v833, %v912
        %v925 = vadd.f32 %v834, %v886
        %v926 = vadd.f32 %v835, %v915
        %v927 = vadd.f32 %v836, %v889
        %v928 = vadd.f32 %v837, %v918
        %v929 = vadd.f32 %v838, %v892
        %v930 = vadd.f32 %v839, %v921
        %v931 = vld [vmem:[%s2] sm:$0x3]
        %v933 = vperm.slane %v931, 0
        %v934 = vperm.slane %v931, 1
        %v937 = vadd.f32 %v923, %v933
        %v938 = vadd.f32 %v924, %v934
        %v939 = vadd.f32 %v925, %v933
        %v940 = vadd.f32 %v926, %v934
        %v941 = vadd.f32 %v927, %v933
        %v942 = vadd.f32 %v928, %v934
        %v943 = vadd.f32 %v929, %v933
        %v944 = vadd.f32 %v930, %v934
        %v945 = vsub.f32 0.0, %v937
        %v946 = vsub.f32 0.0, %v938
        %v947 = vsub.f32 0.0, %v939
        %v948 = vsub.f32 0.0, %v940
        %v949 = vsub.f32 0.0, %v941
        %v950 = vsub.f32 0.0, %v942
        %v951 = vsub.f32 0.0, %v943
        %v952 = vsub.f32 0.0, %v944
        %v953 = vmul.f32 %v945, 1.442695
        %v954 = vpow.pop %v953
        %v955 = vmul.f32 %v946, 1.442695
        %v956 = vpow.pop %v955
        %v957 = vmul.f32 %v947, 1.442695
        %v958 = vpow.pop %v957
        %v959 = vmul.f32 %v948, 1.442695
        %v960 = vpow.pop %v959
        %v961 = vmul.f32 %v949, 1.442695
        %v962 = vpow.pop %v961
        %v963 = vmul.f32 %v950, 1.442695
        %v964 = vpow.pop %v963
        %v965 = vmul.f32 %v951, 1.442695
        %v966 = vpow.pop %v965
        %v967 = vmul.f32 %v952, 1.442695
        %v968 = vpow.pop %v967
        %v969 = vadd.f32 %v954, 1.0
        %v970 = vadd.f32 %v956, 1.0
        %v971 = vadd.f32 %v958, 1.0
        %v972 = vadd.f32 %v960, 1.0
        %v973 = vadd.f32 %v962, 1.0
        %v974 = vadd.f32 %v964, 1.0
        %v975 = vadd.f32 %v966, 1.0
        %v976 = vadd.f32 %v968, 1.0
        %v977 = vrcp.pop %v969
        %v978 = vmul.f32 %v969, %v977
        %v979 = vsub.f32 1.0, %v978
        %v980 = vmul.f32 %v977, %v979
        %v981 = vadd.f32 %v977, %v980
        %vm982 = vweird.f32 %v969
        %vm983 = vweird.f32 %v977
        %vm984 = vmor %vm982, %vm983
        %v985 = vsel %vm984, %v977, %v981
        %v986 = vand.u32 2147483647, %v969
        %vm987 = vcmp.eq.f32.partialorder %v986, 8.507059e+37
        %v988 = vand.u32 %v969, 2147483648
        %v989 = vor.u32 1.1754944e-38, %v988
        %v990 = vsel %vm987, %v989, %v985
        %v991 = vrcp.pop %v970
        %v992 = vmul.f32 %v970, %v991
        %v993 = vsub.f32 1.0, %v992
        %v994 = vmul.f32 %v991, %v993
        %v995 = vadd.f32 %v991, %v994
        %vm996 = vweird.f32 %v970
        %vm997 = vweird.f32 %v991
        %vm998 = vmor %vm996, %vm997
        %v999 = vsel %vm998, %v991, %v995
        %v1000 = vand.u32 2147483647, %v970
        %vm1001 = vcmp.eq.f32.partialorder %v1000, 8.507059e+37
        %v1002 = vand.u32 %v970, 2147483648
        %v1003 = vor.u32 1.1754944e-38, %v1002
        %v1004 = vsel %vm1001, %v1003, %v999
        %v1005 = vrcp.pop %v971
        %v1006 = vmul.f32 %v971, %v1005
        %v1007 = vsub.f32 1.0, %v1006
        %v1008 = vmul.f32 %v1005, %v1007
        %v1009 = vadd.f32 %v1005, %v1008
        %vm1010 = vweird.f32 %v971
        %vm1011 = vweird.f32 %v1005
        %vm1012 = vmor %vm1010, %vm1011
        %v1013 = vsel %vm1012, %v1005, %v1009
        %v1014 = vand.u32 2147483647, %v971
        %vm1015 = vcmp.eq.f32.partialorder %v1014, 8.507059e+37
        %v1016 = vand.u32 %v971, 2147483648
        %v1017 = vor.u32 1.1754944e-38, %v1016
        %v1018 = vsel %vm1015, %v1017, %v1013
        %v1019 = vrcp.pop %v972
        %v1020 = vmul.f32 %v972, %v1019
        %v1021 = vsub.f32 1.0, %v1020
        %v1022 = vmul.f32 %v1019, %v1021
        %v1023 = vadd.f32 %v1019, %v1022
        %vm1024 = vweird.f32 %v972
        %vm1025 = vweird.f32 %v1019
        %vm1026 = vmor %vm1024, %vm1025
        %v1027 = vsel %vm1026, %v1019, %v1023
        %v1028 = vand.u32 2147483647, %v972
        %vm1029 = vcmp.eq.f32.partialorder %v1028, 8.507059e+37
        %v1030 = vand.u32 %v972, 2147483648
        %v1031 = vor.u32 1.1754944e-38, %v1030
        %v1032 = vsel %vm1029, %v1031, %v1027
        %v1033 = vrcp.pop %v973
        %v1034 = vmul.f32 %v973, %v1033
        %v1035 = vsub.f32 1.0, %v1034
        %v1036 = vmul.f32 %v1033, %v1035
        %v1037 = vadd.f32 %v1033, %v1036
        %vm1038 = vweird.f32 %v973
        %vm1039 = vweird.f32 %v1033
        %vm1040 = vmor %vm1038, %vm1039
        %v1041 = vsel %vm1040, %v1033, %v1037
        %v1042 = vand.u32 2147483647, %v973
        %vm1043 = vcmp.eq.f32.partialorder %v1042, 8.507059e+37
        %v1044 = vand.u32 %v973, 2147483648
        %v1045 = vor.u32 1.1754944e-38, %v1044
        %v1046 = vsel %vm1043, %v1045, %v1041
        %v1047 = vrcp.pop %v974
        %v1048 = vmul.f32 %v974, %v1047
        %v1049 = vsub.f32 1.0, %v1048
        %v1050 = vmul.f32 %v1047, %v1049
        %v1051 = vadd.f32 %v1047, %v1050
        %vm1052 = vweird.f32 %v974
        %vm1053 = vweird.f32 %v1047
        %vm1054 = vmor %vm1052, %vm1053
        %v1055 = vsel %vm1054, %v1047, %v1051
        %v1056 = vand.u32 2147483647, %v974
        %vm1057 = vcmp.eq.f32.partialorder %v1056, 8.507059e+37
        %v1058 = vand.u32 %v974, 2147483648
        %v1059 = vor.u32 1.1754944e-38, %v1058
        %v1060 = vsel %vm1057, %v1059, %v1055
        %v1061 = vrcp.pop %v975
        %v1062 = vmul.f32 %v975, %v1061
        %v1063 = vsub.f32 1.0, %v1062
        %v1064 = vmul.f32 %v1061, %v1063
        %v1065 = vadd.f32 %v1061, %v1064
        %vm1066 = vweird.f32 %v975
        %vm1067 = vweird.f32 %v1061
        %vm1068 = vmor %vm1066, %vm1067
        %v1069 = vsel %vm1068, %v1061, %v1065
        %v1070 = vand.u32 2147483647, %v975
        %vm1071 = vcmp.eq.f32.partialorder %v1070, 8.507059e+37
        %v1072 = vand.u32 %v975, 2147483648
        %v1073 = vor.u32 1.1754944e-38, %v1072
        %v1074 = vsel %vm1071, %v1073, %v1069
        %v1075 = vrcp.pop %v976
        %v1076 = vmul.f32 %v976, %v1075
        %v1077 = vsub.f32 1.0, %v1076
        %v1078 = vmul.f32 %v1075, %v1077
        %v1079 = vadd.f32 %v1075, %v1078
        %vm1080 = vweird.f32 %v976
        %vm1081 = vweird.f32 %v1075
        %vm1082 = vmor %vm1080, %vm1081
        %v1083 = vsel %vm1082, %v1075, %v1079
        %v1084 = vand.u32 2147483647, %v976
        %vm1085 = vcmp.eq.f32.partialorder %v1084, 8.507059e+37
        %v1086 = vand.u32 %v976, 2147483648
        %v1087 = vor.u32 1.1754944e-38, %v1086
        %v1088 = vsel %vm1085, %v1087, %v1083
        %v1089 = vld [vmem:[%s3] sm:$0xff]
        %v1090 = vld [vmem:[%s3 + $0x8] sm:$0x3f]
        %vm1091 = vcmask 228352
        %v1093 = vsel %vm1091, %v1089, 0
        %v1096 = vsel %vm1091, %v1090, 0
        %vm1098 = vcmask 1043456
        %v1100 = vsel %vm1098, %v1074, 0
        %v1103 = vsel %vm1098, %v1088, 0
        %1105 = vmatpush.msra.mxu0 0.0
        %1106 = vmatpush.msra.mxu0 0.0
        %1107 = vmatpush.msra.mxu0 0.0
        %1108 = vmatpush.msra.mxu0 0.0
        %1109 = vmatpush.msra.mxu0 0.0
        %1110 = vmatpush.msra.mxu0 0.0
        %1111 = vmatpush.msra.mxu0 0.0
        %1112 = vmatpush.msra.mxu0 0.0
        %1113 = vmatpush.msra.mxu0 0.0
        %1114 = vmatpush.msra.mxu0 0.0
        %1115 = vmatpush.msra.mxu0 0.0
        %1116 = vmatpush.msra.mxu0 0.0
        %1117 = vmatpush.msra.mxu0 %v1100
        %1118 = vmatpush.msra.mxu0 %v1046
        %1119 = vmatpush.msra.mxu0 %v1018
        %1120 = vmatpush.msra.mxu0 %v990
        %1121 = vmatmul.f32.gmra.mxu0 %v1093
        %v1122 = vpop.f32.mrf.mxu0
        %v1123 = vadd.f32 0.0, %v1122
        %1124 = vmatmul.f32.gmra.mxu0 %v1096
        %v1125 = vpop.f32.mrf.mxu0
        %v1126 = vadd.f32 0.0, %v1125
        %1127 = vdwg.mxu0
        %1128 = vmatpush.msra.mxu0 0.0
        %1129 = vmatpush.msra.mxu0 0.0
        %1130 = vmatpush.msra.mxu0 0.0
        %1131 = vmatpush.msra.mxu0 0.0
        %1132 = vmatpush.msra.mxu0 0.0
        %1133 = vmatpush.msra.mxu0 0.0
        %1134 = vmatpush.msra.mxu0 0.0
        %1135 = vmatpush.msra.mxu0 0.0
        %1136 = vmatpush.msra.mxu0 0.0
        %1137 = vmatpush.msra.mxu0 0.0
        %1138 = vmatpush.msra.mxu0 0.0
        %1139 = vmatpush.msra.mxu0 0.0
        %1140 = vmatpush.msra.mxu0 %v1103
        %1141 = vmatpush.msra.mxu0 %v1060
        %1142 = vmatpush.msra.mxu0 %v1032
        %1143 = vmatpush.msra.mxu0 %v1004
        %1144 = vmatmul.f32.gmra.mxu0 %v1093
        %v1145 = vpop.f32.mrf.mxu0
        %v1146 = vadd.f32 0.0, %v1145
        %1147 = vmatmul.f32.gmra.mxu0 %v1096
        %v1148 = vpop.f32.mrf.mxu0
        %v1149 = vadd.f32 0.0, %v1148
        %1150 = vdwg.mxu0
        %v1151 = vld [vmem:[%s4] sm:$0xff]
        %v1152 = vld [vmem:[%s4 + $0x8] sm:$0xff]
        %v1153 = vld [vmem:[%s4 + $0x10] sm:$0xff]
        %v1154 = vld [vmem:[%s4 + $0x18] sm:$0xff]
        %v1155 = vld [vmem:[%s4 + $0x20] sm:$0xff]
        %v1156 = vld [vmem:[%s4 + $0x28] sm:$0xff]
        %v1157 = vld [vmem:[%s4 + $0x30] sm:$0xff]
        %v1158 = vld [vmem:[%s4 + $0x38] sm:$0xff]
        %v1159 = vld [vmem:[%s4 + $0x40] sm:$0xff]
        %v1160 = vld [vmem:[%s4 + $0x48] sm:$0xff]
        %v1161 = vld [vmem:[%s4 + $0x50] sm:$0xff]
        %v1162 = vld [vmem:[%s4 + $0x58] sm:$0xff]
        %v1163 = vld [vmem:[%s4 + $0x60] sm:$0xff]
        %v1164 = vld [vmem:[%s4 + $0x68] sm:$0xff]
        %v1165 = vld [vmem:[%s4 + $0x70] sm:$0xff]
        %v1166 = vld [vmem:[%s4 + $0x78] sm:$0xff]
        %v1167 = vld [vmem:[%s4 + $0x80] sm:$0xff]
        %v1168 = vld [vmem:[%s4 + $0x88] sm:$0xff]
        %v1169 = vld [vmem:[%s4 + $0x90] sm:$0xff]
        %v1170 = vld [vmem:[%s4 + $0x98] sm:$0xff]
        %v1171 = vld [vmem:[%s4 + $0xa0] sm:$0xff]
        %vm1172 = vcmask 326656
        %v1174 = vsel %vm1172, %v1146, 0
        %v1177 = vsel %vm1172, %v1149, 0
        %1179 = vmatpush.msra.mxu0 %v1166
        %1180 = vmatpush.msra.mxu0 %v1165
        %1181 = vmatpush.msra.mxu0 %v1164
        %1182 = vmatpush.msra.mxu0 %v1163
        %1183 = vmatpush.msra.mxu0 %v1162
        %1184 = vmatpush.msra.mxu0 %v1161
        %1185 = vmatpush.msra.mxu0 %v1160
        %1186 = vmatpush.msra.mxu0 %v1159
        %1187 = vmatpush.msra.mxu0 %v1158
        %1188 = vmatpush.msra.mxu0 %v1157
        %1189 = vmatpush.msra.mxu0 %v1156
        %1190 = vmatpush.msra.mxu0 %v1155
        %1191 = vmatpush.msra.mxu0 %v1154
        %1192 = vmatpush.msra.mxu0 %v1153
        %1193 = vmatpush.msra.mxu0 %v1152
        %1194 = vmatpush.msra.mxu0 %v1151
        %1195 = vmatmul.f32.gmra.mxu0 %v1123
        %v1196 = vpop.f32.mrf.mxu0
        %v1197 = vadd.f32 0.0, %v1196
        %1198 = vmatmul.f32.gmra.mxu0 %v1126
        %v1199 = vpop.f32.mrf.mxu0
        %v1200 = vadd.f32 0.0, %v1199
        %1201 = vdwg.mxu0
        %1202 = vmatpush.msra.mxu0 0.0
        %1203 = vmatpush.msra.mxu0 0.0
        %1204 = vmatpush.msra.mxu0 0.0
        %1205 = vmatpush.msra.mxu0 0.0
        %1206 = vmatpush.msra.mxu0 0.0
        %1207 = vmatpush.msra.mxu0 0.0
        %1208 = vmatpush.msra.mxu0 0.0
        %1209 = vmatpush.msra.mxu0 0.0
        %1210 = vmatpush.msra.mxu0 0.0
        %1211 = vmatpush.msra.mxu0 0.0
        %1212 = vmatpush.msra.mxu0 0.0
        %1213 = vmatpush.msra.mxu0 %v1171
        %1214 = vmatpush.msra.mxu0 %v1170
        %1215 = vmatpush.msra.mxu0 %v1169
        %1216 = vmatpush.msra.mxu0 %v1168
        %1217 = vmatpush.msra.mxu0 %v1167
        %1218 = vmatmul.f32.gmra.mxu0 %v1174
        %v1219 = vpop.f32.mrf.mxu0
        %v1220 = vadd.f32 %v1197, %v1219
        %1221 = vmatmul.f32.gmra.mxu0 %v1177
        %v1222 = vpop.f32.mrf.mxu0
        %v1223 = vadd.f32 %v1200, %v1222
        %1224 = vdwg.mxu0
        %vm1225 = vcmask 687104
        %1226 = vst.msk [vmem:[#allocation2] sm:$0xff] %vm1225, %v1220
        %vm1227 = vcmask 685056
        %1228 = vst.msk [vmem:[#allocation2 + $0x8] sm:$0x3f] %vm1227, %v1223
        %v1229 = vld [vmem:[#allocation2] sm:$0xff]
        %v1230 = vld [vmem:[#allocation2 + $0x8] sm:$0x3]
        %v1231 = vld [vmem:[%s5] sm:$0xff]
        %v1232 = vld [vmem:[%s5 + $0x8] sm:$0xff]
        %v1233 = vld [vmem:[%s5 + $0x10] sm:$0xff]
        %v1234 = vld [vmem:[%s5 + $0x18] sm:$0xff]
        %v1235 = vld [vmem:[%s5 + $0x20] sm:$0xff]
        %v1236 = vld [vmem:[%s5 + $0x28] sm:$0xff]
        %v1237 = vld [vmem:[%s5 + $0x30] sm:$0xff]
        %v1238 = vld [vmem:[%s5 + $0x38] sm:$0xff]
        %v1239 = vld [vmem:[%s5 + $0x40] sm:$0xff]
        %v1240 = vld [vmem:[%s5 + $0x48] sm:$0xff]
        %v1241 = vld [vmem:[%s5 + $0x50] sm:$0xff]
        %v1242 = vld [vmem:[%s5 + $0x58] sm:$0xff]
        %v1243 = vld [vmem:[%s5 + $0x60] sm:$0xff]
        %v1244 = vld [vmem:[%s5 + $0x68] sm:$0xff]
        %v1245 = vld [vmem:[%s5 + $0x70] sm:$0xff]
        %v1246 = vld [vmem:[%s5 + $0x78] sm:$0xff]
        %v1247 = vld [vmem:[%s5 + $0x80] sm:$0xff]
        %v1248 = vld [vmem:[%s5 + $0x88] sm:$0xff]
        %v1249 = vld [vmem:[%s5 + $0x90] sm:$0xff]
        %v1250 = vld [vmem:[%s5 + $0x98] sm:$0xff]
        %v1251 = vld [vmem:[%s5 + $0xa0] sm:$0xf]
        %v1252 = vld [vmem:[%s5 + $0xa8] sm:$0xf]
        %v1253 = vld [vmem:[#allocation2 + $0x1] sm:$0xff]
        %v1254 = vld [vmem:[#allocation2 + $0x9] sm:$0x3]
        %s1255 = scalar_lea.vmem %s5, 176
        %v1256 = vld [vmem:[%s1255] sm:$0xff]
        %v1257 = vld [vmem:[%s1255 + $0x8] sm:$0xff]
        %v1258 = vld [vmem:[%s1255 + $0x10] sm:$0xff]
        %v1259 = vld [vmem:[%s1255 + $0x18] sm:$0xff]
        %v1260 = vld [vmem:[%s1255 + $0x20] sm:$0xff]
        %v1261 = vld [vmem:[%s1255 + $0x28] sm:$0xff]
        %v1262 = vld [vmem:[%s1255 + $0x30] sm:$0xff]
        %v1263 = vld [vmem:[%s1255 + $0x38] sm:$0xff]
        %v1264 = vld [vmem:[%s1255 + $0x40] sm:$0xff]
        %v1265 = vld [vmem:[%s1255 + $0x48] sm:$0xff]
        %v1266 = vld [vmem:[%s1255 + $0x50] sm:$0xff]
        %v1267 = vld [vmem:[%s1255 + $0x58] sm:$0xff]
        %v1268 = vld [vmem:[%s1255 + $0x60] sm:$0xff]
        %v1269 = vld [vmem:[%s1255 + $0x68] sm:$0xff]
        %v1270 = vld [vmem:[%s1255 + $0x70] sm:$0xff]
        %v1271 = vld [vmem:[%s1255 + $0x78] sm:$0xff]
        %v1272 = vld [vmem:[%s1255 + $0x80] sm:$0xff]
        %v1273 = vld [vmem:[%s1255 + $0x88] sm:$0xff]
        %v1274 = vld [vmem:[%s1255 + $0x90] sm:$0xff]
        %v1275 = vld [vmem:[%s1255 + $0x98] sm:$0xff]
        %v1276 = vld [vmem:[%s1255 + $0xa0] sm:$0xf]
        %v1277 = vld [vmem:[%s1255 + $0xa8] sm:$0xf]
        %v1279 = vsel %vm1225, %v1253, 0
        %v1282 = vsel %vm1225, %v1254, 0
        %v1285 = vsel %vm1098, %v1276, 0
        %v1288 = vsel %vm1098, %v1277, 0
        %1290 = vmatpush.msra.mxu0 0.0
        %1291 = vmatpush.msra.mxu0 0.0
        %1292 = vmatpush.msra.mxu0 0.0
        %1293 = vmatpush.msra.mxu0 0.0
        %1294 = vmatpush.msra.mxu0 0.0
        %1295 = vmatpush.msra.mxu0 %v1285
        %1296 = vmatpush.msra.mxu0 %v1274
        %1297 = vmatpush.msra.mxu0 %v1272
        %1298 = vmatpush.msra.mxu0 %v1270
        %1299 = vmatpush.msra.mxu0 %v1268
        %1300 = vmatpush.msra.mxu0 %v1266
        %1301 = vmatpush.msra.mxu0 %v1264
        %1302 = vmatpush.msra.mxu0 %v1262
        %1303 = vmatpush.msra.mxu0 %v1260
        %1304 = vmatpush.msra.mxu0 %v1258
        %1305 = vmatpush.msra.mxu0 %v1256
        %1306 = vmatmul.f32.gmra.mxu0 %v1279
        %v1307 = vpop.f32.mrf.mxu0
        %v1308 = vadd.f32 0.0, %v1307
        %1309 = vmatmul.f32.gmra.mxu0 %v1282
        %v1310 = vpop.f32.mrf.mxu0
        %v1311 = vadd.f32 0.0, %v1310
        %1312 = vdwg.mxu0
        %1313 = vmatpush.msra.mxu0 0.0
        %1314 = vmatpush.msra.mxu0 0.0
        %1315 = vmatpush.msra.mxu0 0.0
        %1316 = vmatpush.msra.mxu0 0.0
        %1317 = vmatpush.msra.mxu0 0.0
        %1318 = vmatpush.msra.mxu0 %v1288
        %1319 = vmatpush.msra.mxu0 %v1275
        %1320 = vmatpush.msra.mxu0 %v1273
        %1321 = vmatpush.msra.mxu0 %v1271
        %1322 = vmatpush.msra.mxu0 %v1269
        %1323 = vmatpush.msra.mxu0 %v1267
        %1324 = vmatpush.msra.mxu0 %v1265
        %1325 = vmatpush.msra.mxu0 %v1263
        %1326 = vmatpush.msra.mxu0 %v1261
        %1327 = vmatpush.msra.mxu0 %v1259
        %1328 = vmatpush.msra.mxu0 %v1257
        %1329 = vmatmul.f32.gmra.mxu0 %v1279
        %v1330 = vpop.f32.mrf.mxu0
        %v1331 = vadd.f32 0.0, %v1330
        %1332 = vmatmul.f32.gmra.mxu0 %v1282
        %v1333 = vpop.f32.mrf.mxu0
        %v1334 = vadd.f32 0.0, %v1333
        %1335 = vdwg.mxu0
        %v1337 = vsel %vm1225, %v1229, 0
        %v1340 = vsel %vm1225, %v1230, 0
        %v1343 = vsel %vm1098, %v1251, 0
        %v1346 = vsel %vm1098, %v1252, 0
        %1348 = vmatpush.msra.mxu0 0.0
        %1349 = vmatpush.msra.mxu0 0.0
        %1350 = vmatpush.msra.mxu0 0.0
        %1351 = vmatpush.msra.mxu0 0.0
        %1352 = vmatpush.msra.mxu0 0.0
        %1353 = vmatpush.msra.mxu0 %v1343
        %1354 = vmatpush.msra.mxu0 %v1249
        %1355 = vmatpush.msra.mxu0 %v1247
        %1356 = vmatpush.msra.mxu0 %v1245
        %1357 = vmatpush.msra.mxu0 %v1243
        %1358 = vmatpush.msra.mxu0 %v1241
        %1359 = vmatpush.msra.mxu0 %v1239
        %1360 = vmatpush.msra.mxu0 %v1237
        %1361 = vmatpush.msra.mxu0 %v1235
        %1362 = vmatpush.msra.mxu0 %v1233
        %1363 = vmatpush.msra.mxu0 %v1231
        %1364 = vmatmul.f32.gmra.mxu0 %v1337
        %v1365 = vpop.f32.mrf.mxu0
        %v1366 = vadd.f32 %v1308, %v1365
        %1367 = vmatmul.f32.gmra.mxu0 %v1340
        %v1368 = vpop.f32.mrf.mxu0
        %v1369 = vadd.f32 %v1311, %v1368
        %1370 = vdwg.mxu0
        %1371 = vmatpush.msra.mxu0 0.0
        %1372 = vmatpush.msra.mxu0 0.0
        %1373 = vmatpush.msra.mxu0 0.0
        %1374 = vmatpush.msra.mxu0 0.0
        %1375 = vmatpush.msra.mxu0 0.0
        %1376 = vmatpush.msra.mxu0 %v1346
        %1377 = vmatpush.msra.mxu0 %v1250
        %1378 = vmatpush.msra.mxu0 %v1248
        %1379 = vmatpush.msra.mxu0 %v1246
        %1380 = vmatpush.msra.mxu0 %v1244
        %1381 = vmatpush.msra.mxu0 %v1242
        %1382 = vmatpush.msra.mxu0 %v1240
        %1383 = vmatpush.msra.mxu0 %v1238
        %1384 = vmatpush.msra.mxu0 %v1236
        %1385 = vmatpush.msra.mxu0 %v1234
        %1386 = vmatpush.msra.mxu0 %v1232
        %1387 = vmatmul.f32.gmra.mxu0 %v1337
        %v1388 = vpop.f32.mrf.mxu0
        %v1389 = vadd.f32 %v1331, %v1388
        %1390 = vmatmul.f32.gmra.mxu0 %v1340
        %v1391 = vpop.f32.mrf.mxu0
        %v1392 = vadd.f32 %v1334, %v1391
        %1393 = vdwg.mxu0
        %v1394 = vld [vmem:[#allocation2 + $0x2] sm:$0xff]
        %v1395 = vld [vmem:[#allocation2 + $0xa] sm:$0x3]
        %s1396 = scalar_lea.vmem %s5, 352
        %v1397 = vld [vmem:[%s1396] sm:$0xff]
        %v1398 = vld [vmem:[%s1396 + $0x8] sm:$0xff]
        %v1399 = vld [vmem:[%s1396 + $0x10] sm:$0xff]
        %v1400 = vld [vmem:[%s1396 + $0x18] sm:$0xff]
        %v1401 = vld [vmem:[%s1396 + $0x20] sm:$0xff]
        %v1402 = vld [vmem:[%s1396 + $0x28] sm:$0xff]
        %v1403 = vld [vmem:[%s1396 + $0x30] sm:$0xff]
        %v1404 = vld [vmem:[%s1396 + $0x38] sm:$0xff]
        %v1405 = vld [vmem:[%s1396 + $0x40] sm:$0xff]
        %v1406 = vld [vmem:[%s1396 + $0x48] sm:$0xff]
        %v1407 = vld [vmem:[%s1396 + $0x50] sm:$0xff]
        %v1408 = vld [vmem:[%s1396 + $0x58] sm:$0xff]
        %v1409 = vld [vmem:[%s1396 + $0x60] sm:$0xff]
        %v1410 = vld [vmem:[%s1396 + $0x68] sm:$0xff]
        %v1411 = vld [vmem:[%s1396 + $0x70] sm:$0xff]
        %v1412 = vld [vmem:[%s1396 + $0x78] sm:$0xff]
        %v1413 = vld [vmem:[%s1396 + $0x80] sm:$0xff]
        %v1414 = vld [vmem:[%s1396 + $0x88] sm:$0xff]
        %v1415 = vld [vmem:[%s1396 + $0x90] sm:$0xff]
        %v1416 = vld [vmem:[%s1396 + $0x98] sm:$0xff]
        %v1417 = vld [vmem:[%s1396 + $0xa0] sm:$0xf]
        %v1418 = vld [vmem:[%s1396 + $0xa8] sm:$0xf]
        %v1420 = vsel %vm1225, %v1394, 0
        %v1423 = vsel %vm1225, %v1395, 0
        %v1426 = vsel %vm1098, %v1417, 0
        %v1429 = vsel %vm1098, %v1418, 0
        %1431 = vmatpush.msra.mxu0 0.0
        %1432 = vmatpush.msra.mxu0 0.0
        %1433 = vmatpush.msra.mxu0 0.0
        %1434 = vmatpush.msra.mxu0 0.0
        %1435 = vmatpush.msra.mxu0 0.0
        %1436 = vmatpush.msra.mxu0 %v1426
        %1437 = vmatpush.msra.mxu0 %v1415
        %1438 = vmatpush.msra.mxu0 %v1413
        %1439 = vmatpush.msra.mxu0 %v1411
        %1440 = vmatpush.msra.mxu0 %v1409
        %1441 = vmatpush.msra.mxu0 %v1407
        %1442 = vmatpush.msra.mxu0 %v1405
        %1443 = vmatpush.msra.mxu0 %v1403
        %1444 = vmatpush.msra.mxu0 %v1401
        %1445 = vmatpush.msra.mxu0 %v1399
        %1446 = vmatpush.msra.mxu0 %v1397
        %1447 = vmatmul.f32.gmra.mxu0 %v1420
        %v1448 = vpop.f32.mrf.mxu0
        %v1449 = vadd.f32 0.0, %v1448
        %1450 = vmatmul.f32.gmra.mxu0 %v1423
        %v1451 = vpop.f32.mrf.mxu0
        %v1452 = vadd.f32 0.0, %v1451
        %1453 = vdwg.mxu0
        %1454 = vmatpush.msra.mxu0 0.0
        %1455 = vmatpush.msra.mxu0 0.0
        %1456 = vmatpush.msra.mxu0 0.0
        %1457 = vmatpush.msra.mxu0 0.0
        %1458 = vmatpush.msra.mxu0 0.0
        %1459 = vmatpush.msra.mxu0 %v1429
        %1460 = vmatpush.msra.mxu0 %v1416
        %1461 = vmatpush.msra.mxu0 %v1414
        %1462 = vmatpush.msra.mxu0 %v1412
        %1463 = vmatpush.msra.mxu0 %v1410
        %1464 = vmatpush.msra.mxu0 %v1408
        %1465 = vmatpush.msra.mxu0 %v1406
        %1466 = vmatpush.msra.mxu0 %v1404
        %1467 = vmatpush.msra.mxu0 %v1402
        %1468 = vmatpush.msra.mxu0 %v1400
        %1469 = vmatpush.msra.mxu0 %v1398
        %1470 = vmatmul.f32.gmra.mxu0 %v1420
        %v1471 = vpop.f32.mrf.mxu0
        %v1472 = vadd.f32 0.0, %v1471
        %1473 = vmatmul.f32.gmra.mxu0 %v1423
        %v1474 = vpop.f32.mrf.mxu0
        %v1475 = vadd.f32 0.0, %v1474
        %1476 = vdwg.mxu0
        %v1477 = vadd.f32 %v1366, %v1449
        %v1478 = vadd.f32 %v1389, %v1472
        %v1479 = vadd.f32 %v1369, %v1452
        %v1480 = vadd.f32 %v1392, %v1475
        %v1481 = vld [vmem:[#allocation2 + $0x3] sm:$0xff]
        %v1482 = vld [vmem:[#allocation2 + $0xb] sm:$0x3]
        %s1483 = scalar_lea.vmem %s5, 528
        %v1484 = vld [vmem:[%s1483] sm:$0xff]
        %v1485 = vld [vmem:[%s1483 + $0x8] sm:$0xff]
        %v1486 = vld [vmem:[%s1483 + $0x10] sm:$0xff]
        %v1487 = vld [vmem:[%s1483 + $0x18] sm:$0xff]
        %v1488 = vld [vmem:[%s1483 + $0x20] sm:$0xff]
        %v1489 = vld [vmem:[%s1483 + $0x28] sm:$0xff]
        %v1490 = vld [vmem:[%s1483 + $0x30] sm:$0xff]
        %v1491 = vld [vmem:[%s1483 + $0x38] sm:$0xff]
        %v1492 = vld [vmem:[%s1483 + $0x40] sm:$0xff]
        %v1493 = vld [vmem:[%s1483 + $0x48] sm:$0xff]
        %v1494 = vld [vmem:[%s1483 + $0x50] sm:$0xff]
        %v1495 = vld [vmem:[%s1483 + $0x58] sm:$0xff]
        %v1496 = vld [vmem:[%s1483 + $0x60] sm:$0xff]
        %v1497 = vld [vmem:[%s1483 + $0x68] sm:$0xff]
        %v1498 = vld [vmem:[%s1483 + $0x70] sm:$0xff]
        %v1499 = vld [vmem:[%s1483 + $0x78] sm:$0xff]
        %v1500 = vld [vmem:[%s1483 + $0x80] sm:$0xff]
        %v1501 = vld [vmem:[%s1483 + $0x88] sm:$0xff]
        %v1502 = vld [vmem:[%s1483 + $0x90] sm:$0xff]
        %v1503 = vld [vmem:[%s1483 + $0x98] sm:$0xff]
        %v1504 = vld [vmem:[%s1483 + $0xa0] sm:$0xf]
        %v1505 = vld [vmem:[%s1483 + $0xa8] sm:$0xf]
        %v1507 = vsel %vm1225, %v1481, 0
        %v1510 = vsel %vm1225, %v1482, 0
        %v1513 = vsel %vm1098, %v1504, 0
        %v1516 = vsel %vm1098, %v1505, 0
        %1518 = vmatpush.msra.mxu0 0.0
        %1519 = vmatpush.msra.mxu0 0.0
        %1520 = vmatpush.msra.mxu0 0.0
        %1521 = vmatpush.msra.mxu0 0.0
        %1522 = vmatpush.msra.mxu0 0.0
        %1523 = vmatpush.msra.mxu0 %v1513
        %1524 = vmatpush.msra.mxu0 %v1502
        %1525 = vmatpush.msra.mxu0 %v1500
        %1526 = vmatpush.msra.mxu0 %v1498
        %1527 = vmatpush.msra.mxu0 %v1496
        %1528 = vmatpush.msra.mxu0 %v1494
        %1529 = vmatpush.msra.mxu0 %v1492
        %1530 = vmatpush.msra.mxu0 %v1490
        %1531 = vmatpush.msra.mxu0 %v1488
        %1532 = vmatpush.msra.mxu0 %v1486
        %1533 = vmatpush.msra.mxu0 %v1484
        %1534 = vmatmul.f32.gmra.mxu0 %v1507
        %v1535 = vpop.f32.mrf.mxu0
        %v1536 = vadd.f32 0.0, %v1535
        %1537 = vmatmul.f32.gmra.mxu0 %v1510
        %v1538 = vpop.f32.mrf.mxu0
        %v1539 = vadd.f32 0.0, %v1538
        %1540 = vdwg.mxu0
        %1541 = vmatpush.msra.mxu0 0.0
        %1542 = vmatpush.msra.mxu0 0.0
        %1543 = vmatpush.msra.mxu0 0.0
        %1544 = vmatpush.msra.mxu0 0.0
        %1545 = vmatpush.msra.mxu0 0.0
        %1546 = vmatpush.msra.mxu0 %v1516
        %1547 = vmatpush.msra.mxu0 %v1503
        %1548 = vmatpush.msra.mxu0 %v1501
        %1549 = vmatpush.msra.mxu0 %v1499
        %1550 = vmatpush.msra.mxu0 %v1497
        %1551 = vmatpush.msra.mxu0 %v1495
        %1552 = vmatpush.msra.mxu0 %v1493
        %1553 = vmatpush.msra.mxu0 %v1491
        %1554 = vmatpush.msra.mxu0 %v1489
        %1555 = vmatpush.msra.mxu0 %v1487
        %1556 = vmatpush.msra.mxu0 %v1485
        %1557 = vmatmul.f32.gmra.mxu0 %v1507
        %v1558 = vpop.f32.mrf.mxu0
        %v1559 = vadd.f32 0.0, %v1558
        %1560 = vmatmul.f32.gmra.mxu0 %v1510
        %v1561 = vpop.f32.mrf.mxu0
        %v1562 = vadd.f32 0.0, %v1561
        %1563 = vdwg.mxu0
        %v1564 = vadd.f32 %v1477, %v1536
        %v1565 = vadd.f32 %v1478, %v1559
        %v1566 = vadd.f32 %v1479, %v1539
        %v1567 = vadd.f32 %v1480, %v1562
        %v1568 = vld [vmem:[#allocation2 + $0x4] sm:$0xff]
        %v1569 = vld [vmem:[#allocation2 + $0xc] sm:$0x3]
        %s1570 = scalar_lea.vmem %s5, 704
        %v1571 = vld [vmem:[%s1570] sm:$0xff]
        %v1572 = vld [vmem:[%s1570 + $0x8] sm:$0xff]
        %v1573 = vld [vmem:[%s1570 + $0x10] sm:$0xff]
        %v1574 = vld [vmem:[%s1570 + $0x18] sm:$0xff]
        %v1575 = vld [vmem:[%s1570 + $0x20] sm:$0xff]
        %v1576 = vld [vmem:[%s1570 + $0x28] sm:$0xff]
        %v1577 = vld [vmem:[%s1570 + $0x30] sm:$0xff]
        %v1578 = vld [vmem:[%s1570 + $0x38] sm:$0xff]
        %v1579 = vld [vmem:[%s1570 + $0x40] sm:$0xff]
        %v1580 = vld [vmem:[%s1570 + $0x48] sm:$0xff]
        %v1581 = vld [vmem:[%s1570 + $0x50] sm:$0xff]
        %v1582 = vld [vmem:[%s1570 + $0x58] sm:$0xff]
        %v1583 = vld [vmem:[%s1570 + $0x60] sm:$0xff]
        %v1584 = vld [vmem:[%s1570 + $0x68] sm:$0xff]
        %v1585 = vld [vmem:[%s1570 + $0x70] sm:$0xff]
        %v1586 = vld [vmem:[%s1570 + $0x78] sm:$0xff]
        %v1587 = vld [vmem:[%s1570 + $0x80] sm:$0xff]
        %v1588 = vld [vmem:[%s1570 + $0x88] sm:$0xff]
        %v1589 = vld [vmem:[%s1570 + $0x90] sm:$0xff]
        %v1590 = vld [vmem:[%s1570 + $0x98] sm:$0xff]
        %v1591 = vld [vmem:[%s1570 + $0xa0] sm:$0xf]
        %v1592 = vld [vmem:[%s1570 + $0xa8] sm:$0xf]
        %v1594 = vsel %vm1225, %v1568, 0
        %v1597 = vsel %vm1225, %v1569, 0
        %v1600 = vsel %vm1098, %v1591, 0
        %v1603 = vsel %vm1098, %v1592, 0
        %1605 = vmatpush.msra.mxu0 0.0
        %1606 = vmatpush.msra.mxu0 0.0
        %1607 = vmatpush.msra.mxu0 0.0
        %1608 = vmatpush.msra.mxu0 0.0
        %1609 = vmatpush.msra.mxu0 0.0
        %1610 = vmatpush.msra.mxu0 %v1600
        %1611 = vmatpush.msra.mxu0 %v1589
        %1612 = vmatpush.msra.mxu0 %v1587
        %1613 = vmatpush.msra.mxu0 %v1585
        %1614 = vmatpush.msra.mxu0 %v1583
        %1615 = vmatpush.msra.mxu0 %v1581
        %1616 = vmatpush.msra.mxu0 %v1579
        %1617 = vmatpush.msra.mxu0 %v1577
        %1618 = vmatpush.msra.mxu0 %v1575
        %1619 = vmatpush.msra.mxu0 %v1573
        %1620 = vmatpush.msra.mxu0 %v1571
        %1621 = vmatmul.f32.gmra.mxu0 %v1594
        %v1622 = vpop.f32.mrf.mxu0
        %v1623 = vadd.f32 0.0, %v1622
        %1624 = vmatmul.f32.gmra.mxu0 %v1597
        %v1625 = vpop.f32.mrf.mxu0
        %v1626 = vadd.f32 0.0, %v1625
        %1627 = vdwg.mxu0
        %1628 = vmatpush.msra.mxu0 0.0
        %1629 = vmatpush.msra.mxu0 0.0
        %1630 = vmatpush.msra.mxu0 0.0
        %1631 = vmatpush.msra.mxu0 0.0
        %1632 = vmatpush.msra.mxu0 0.0
        %1633 = vmatpush.msra.mxu0 %v1603
        %1634 = vmatpush.msra.mxu0 %v1590
        %1635 = vmatpush.msra.mxu0 %v1588
        %1636 = vmatpush.msra.mxu0 %v1586
        %1637 = vmatpush.msra.mxu0 %v1584
        %1638 = vmatpush.msra.mxu0 %v1582
        %1639 = vmatpush.msra.mxu0 %v1580
        %1640 = vmatpush.msra.mxu0 %v1578
        %1641 = vmatpush.msra.mxu0 %v1576
        %1642 = vmatpush.msra.mxu0 %v1574
        %1643 = vmatpush.msra.mxu0 %v1572
        %1644 = vmatmul.f32.gmra.mxu0 %v1594
        %v1645 = vpop.f32.mrf.mxu0
        %v1646 = vadd.f32 0.0, %v1645
        %1647 = vmatmul.f32.gmra.mxu0 %v1597
        %v1648 = vpop.f32.mrf.mxu0
        %v1649 = vadd.f32 0.0, %v1648
        %1650 = vdwg.mxu0
        %v1651 = vadd.f32 %v1564, %v1623
        %v1652 = vadd.f32 %v1565, %v1646
        %v1653 = vadd.f32 %v1566, %v1626
        %v1654 = vadd.f32 %v1567, %v1649
        %v1655 = vld [vmem:[%s6] sm:$0x3]
        %v1657 = vperm.slane %v1655, 0
        %v1658 = vperm.slane %v1655, 1
        %v1661 = vadd.f32 %v1651, %v1657
        %v1662 = vadd.f32 %v1652, %v1658
        %v1663 = vadd.f32 %v1653, %v1657
        %v1664 = vadd.f32 %v1654, %v1658
        %v1665 = vsub.f32 0.0, %v1661
        %v1666 = vsub.f32 0.0, %v1662
        %v1667 = vsub.f32 0.0, %v1663
        %v1668 = vsub.f32 0.0, %v1664
        %v1669 = vmul.f32 %v1665, 1.442695
        %v1670 = vpow.pop %v1669
        %v1671 = vmul.f32 %v1666, 1.442695
        %v1672 = vpow.pop %v1671
        %v1673 = vmul.f32 %v1667, 1.442695
        %v1674 = vpow.pop %v1673
        %v1675 = vmul.f32 %v1668, 1.442695
        %v1676 = vpow.pop %v1675
        %v1677 = vadd.f32 %v1670, 1.0
        %v1678 = vadd.f32 %v1672, 1.0
        %v1679 = vadd.f32 %v1674, 1.0
        %v1680 = vadd.f32 %v1676, 1.0
        %v1681 = vrcp.pop %v1677
        %v1682 = vmul.f32 %v1677, %v1681
        %v1683 = vsub.f32 1.0, %v1682
        %v1684 = vmul.f32 %v1681, %v1683
        %v1685 = vadd.f32 %v1681, %v1684
        %vm1686 = vweird.f32 %v1677
        %vm1687 = vweird.f32 %v1681
        %vm1688 = vmor %vm1686, %vm1687
        %v1689 = vsel %vm1688, %v1681, %v1685
        %v1690 = vand.u32 2147483647, %v1677
        %vm1691 = vcmp.eq.f32.partialorder %v1690, 8.507059e+37
        %v1692 = vand.u32 %v1677, 2147483648
        %v1693 = vor.u32 1.1754944e-38, %v1692
        %v1694 = vsel %vm1691, %v1693, %v1689
        %v1695 = vrcp.pop %v1678
        %v1696 = vmul.f32 %v1678, %v1695
        %v1697 = vsub.f32 1.0, %v1696
        %v1698 = vmul.f32 %v1695, %v1697
        %v1699 = vadd.f32 %v1695, %v1698
        %vm1700 = vweird.f32 %v1678
        %vm1701 = vweird.f32 %v1695
        %vm1702 = vmor %vm1700, %vm1701
        %v1703 = vsel %vm1702, %v1695, %v1699
        %v1704 = vand.u32 2147483647, %v1678
        %vm1705 = vcmp.eq.f32.partialorder %v1704, 8.507059e+37
        %v1706 = vand.u32 %v1678, 2147483648
        %v1707 = vor.u32 1.1754944e-38, %v1706
        %v1708 = vsel %vm1705, %v1707, %v1703
        %v1709 = vrcp.pop %v1679
        %v1710 = vmul.f32 %v1679, %v1709
        %v1711 = vsub.f32 1.0, %v1710
        %v1712 = vmul.f32 %v1709, %v1711
        %v1713 = vadd.f32 %v1709, %v1712
        %vm1714 = vweird.f32 %v1679
        %vm1715 = vweird.f32 %v1709
        %vm1716 = vmor %vm1714, %vm1715
        %v1717 = vsel %vm1716, %v1709, %v1713
        %v1718 = vand.u32 2147483647, %v1679
        %vm1719 = vcmp.eq.f32.partialorder %v1718, 8.507059e+37
        %v1720 = vand.u32 %v1679, 2147483648
        %v1721 = vor.u32 1.1754944e-38, %v1720
        %v1722 = vsel %vm1719, %v1721, %v1717
        %v1723 = vrcp.pop %v1680
        %v1724 = vmul.f32 %v1680, %v1723
        %v1725 = vsub.f32 1.0, %v1724
        %v1726 = vmul.f32 %v1723, %v1725
        %v1727 = vadd.f32 %v1723, %v1726
        %vm1728 = vweird.f32 %v1680
        %vm1729 = vweird.f32 %v1723
        %vm1730 = vmor %vm1728, %vm1729
        %v1731 = vsel %vm1730, %v1723, %v1727
        %v1732 = vand.u32 2147483647, %v1680
        %vm1733 = vcmp.eq.f32.partialorder %v1732, 8.507059e+37
        %v1734 = vand.u32 %v1680, 2147483648
        %v1735 = vor.u32 1.1754944e-38, %v1734
        %v1736 = vsel %vm1733, %v1735, %v1731
        %v1737 = vld [vmem:[%s7] sm:$0x1f]
        %vm1738 = vcmask 80896
        %v1740 = vsel %vm1738, %v1737, 0
        %vm1742 = vcmask 1041408
        %v1744 = vsel %vm1742, %v1722, 0
        %v1747 = vsel %vm1742, %v1736, 0
        %1749 = vmatpush.msra.mxu0 0.0
        %1750 = vmatpush.msra.mxu0 0.0
        %1751 = vmatpush.msra.mxu0 0.0
        %1752 = vmatpush.msra.mxu0 0.0
        %1753 = vmatpush.msra.mxu0 0.0
        %1754 = vmatpush.msra.mxu0 0.0
        %1755 = vmatpush.msra.mxu0 0.0
        %1756 = vmatpush.msra.mxu0 0.0
        %1757 = vmatpush.msra.mxu0 0.0
        %1758 = vmatpush.msra.mxu0 0.0
        %1759 = vmatpush.msra.mxu0 0.0
        %1760 = vmatpush.msra.mxu0 0.0
        %1761 = vmatpush.msra.mxu0 0.0
        %1762 = vmatpush.msra.mxu0 0.0
        %1763 = vmatpush.msra.mxu0 %v1744
        %1764 = vmatpush.msra.mxu0 %v1694
        %1765 = vmatmul.f32.gmra.mxu0 %v1740
        %v1766 = vpop.f32.mrf.mxu0
        %v1767 = vadd.f32 0.0, %v1766
        %1768 = vdwg.mxu0
        %1769 = vmatpush.msra.mxu0 0.0
        %1770 = vmatpush.msra.mxu0 0.0
        %1771 = vmatpush.msra.mxu0 0.0
        %1772 = vmatpush.msra.mxu0 0.0
        %1773 = vmatpush.msra.mxu0 0.0
        %1774 = vmatpush.msra.mxu0 0.0
        %1775 = vmatpush.msra.mxu0 0.0
        %1776 = vmatpush.msra.mxu0 0.0
        %1777 = vmatpush.msra.mxu0 0.0
        %1778 = vmatpush.msra.mxu0 0.0
        %1779 = vmatpush.msra.mxu0 0.0
        %1780 = vmatpush.msra.mxu0 0.0
        %1781 = vmatpush.msra.mxu0 0.0
        %1782 = vmatpush.msra.mxu0 0.0
        %1783 = vmatpush.msra.mxu0 %v1747
        %1784 = vmatpush.msra.mxu0 %v1708
        %1785 = vmatmul.f32.gmra.mxu0 %v1740
        %v1786 = vpop.f32.mrf.mxu0
        %v1787 = vadd.f32 0.0, %v1786
        %1788 = vdwg.mxu0
        %v1789 = vld [vmem:[%s8] sm:$0xff]
        %v1790 = vld [vmem:[%s8 + $0x8] sm:$0xff]
        %v1791 = vld [vmem:[%s8 + $0x10] sm:$0xff]
        %v1792 = vld [vmem:[%s8 + $0x18] sm:$0xff]
        %v1793 = vld [vmem:[%s8 + $0x20] sm:$0xff]
        %v1794 = vld [vmem:[%s8 + $0x28] sm:$0xff]
        %v1795 = vld [vmem:[%s8 + $0x30] sm:$0xff]
        %v1796 = vld [vmem:[%s8 + $0x38] sm:$0xff]
        %v1797 = vld [vmem:[%s8 + $0x40] sm:$0xff]
        %v1798 = vld [vmem:[%s8 + $0x48] sm:$0xff]
        %v1799 = vld [vmem:[%s8 + $0x50] sm:$0xff]
        %v1800 = vld [vmem:[%s8 + $0x58] sm:$0xff]
        %v1801 = vld [vmem:[%s8 + $0x60] sm:$0xff]
        %v1802 = vld [vmem:[%s8 + $0x68] sm:$0xff]
        %v1803 = vld [vmem:[%s8 + $0x70] sm:$0xff]
        %v1804 = vld [vmem:[%s8 + $0x78] sm:$0xff]
        %v1805 = vld [vmem:[%s8 + $0x80] sm:$0xff]
        %v1806 = vld [vmem:[%s8 + $0x88] sm:$0xff]
        %v1807 = vld [vmem:[%s8 + $0x90] sm:$0xff]
        %v1808 = vld [vmem:[%s8 + $0x98] sm:$0xff]
        %v1810 = vsel %vm517, %v1787, 0
        %1812 = vmatpush.msra.mxu0 %v1804
        %1813 = vmatpush.msra.mxu0 %v1803
        %1814 = vmatpush.msra.mxu0 %v1802
        %1815 = vmatpush.msra.mxu0 %v1801
        %1816 = vmatpush.msra.mxu0 %v1800
        %1817 = vmatpush.msra.mxu0 %v1799
        %1818 = vmatpush.msra.mxu0 %v1798
        %1819 = vmatpush.msra.mxu0 %v1797
        %1820 = vmatpush.msra.mxu0 %v1796
        %1821 = vmatpush.msra.mxu0 %v1795
        %1822 = vmatpush.msra.mxu0 %v1794
        %1823 = vmatpush.msra.mxu0 %v1793
        %1824 = vmatpush.msra.mxu0 %v1792
        %1825 = vmatpush.msra.mxu0 %v1791
        %1826 = vmatpush.msra.mxu0 %v1790
        %1827 = vmatpush.msra.mxu0 %v1789
        %1828 = vmatmul.f32.gmra.mxu0 %v1767
        %v1829 = vpop.f32.mrf.mxu0
        %v1830 = vadd.f32 0.0, %v1829
        %1831 = vdwg.mxu0
        %1832 = vmatpush.msra.mxu0 0.0
        %1833 = vmatpush.msra.mxu0 0.0
        %1834 = vmatpush.msra.mxu0 0.0
        %1835 = vmatpush.msra.mxu0 0.0
        %1836 = vmatpush.msra.mxu0 0.0
        %1837 = vmatpush.msra.mxu0 0.0
        %1838 = vmatpush.msra.mxu0 0.0
        %1839 = vmatpush.msra.mxu0 0.0
        %1840 = vmatpush.msra.mxu0 0.0
        %1841 = vmatpush.msra.mxu0 0.0
        %1842 = vmatpush.msra.mxu0 0.0
        %1843 = vmatpush.msra.mxu0 0.0
        %1844 = vmatpush.msra.mxu0 %v1808
        %1845 = vmatpush.msra.mxu0 %v1807
        %1846 = vmatpush.msra.mxu0 %v1806
        %1847 = vmatpush.msra.mxu0 %v1805
        %1848 = vmatmul.f32.gmra.mxu0 %v1810
        %v1849 = vpop.f32.mrf.mxu0
        %v1850 = vadd.f32 %v1830, %v1849
        %1851 = vdwg.mxu0
        %vm1852 = vcmask 651264
        %1853 = vst.msk [vmem:[#allocation3] sm:$0x1f] %vm1852, %v1850
        %v1854 = vld [vmem:[%s10] sm:$0x1]
        %v1855 = vld [vmem:[#allocation3] sm:$0x1]
        %v1856 = vld [vmem:[%s9] sm:$0xff]
        %v1857 = vld [vmem:[%s9 + $0x8] sm:$0xff]
        %v1858 = vld [vmem:[%s9 + $0x10] sm:$0xff]
        %v1859 = vld [vmem:[%s9 + $0x18] sm:$0xff]
        %v1860 = vld [vmem:[%s9 + $0x20] sm:$0xff]
        %v1861 = vld [vmem:[%s9 + $0x28] sm:$0xff]
        %v1862 = vld [vmem:[%s9 + $0x30] sm:$0xff]
        %v1863 = vld [vmem:[%s9 + $0x38] sm:$0xff]
        %v1864 = vld [vmem:[%s9 + $0x40] sm:$0xff]
        %v1865 = vld [vmem:[%s9 + $0x48] sm:$0xff]
        %vm1866 = vcmask 654336
        %v1868 = vsel %vm1866, %v1855, 0
        %1870 = vmatpush.msra.mxu0 0.0
        %1871 = vmatpush.msra.mxu0 0.0
        %1872 = vmatpush.msra.mxu0 0.0
        %1873 = vmatpush.msra.mxu0 0.0
        %1874 = vmatpush.msra.mxu0 0.0
        %1875 = vmatpush.msra.mxu0 0.0
        %1876 = vmatpush.msra.mxu0 %v1865
        %1877 = vmatpush.msra.mxu0 %v1864
        %1878 = vmatpush.msra.mxu0 %v1863
        %1879 = vmatpush.msra.mxu0 %v1862
        %1880 = vmatpush.msra.mxu0 %v1861
        %1881 = vmatpush.msra.mxu0 %v1860
        %1882 = vmatpush.msra.mxu0 %v1859
        %1883 = vmatpush.msra.mxu0 %v1858
        %1884 = vmatpush.msra.mxu0 %v1857
        %1885 = vmatpush.msra.mxu0 %v1856
        %1886 = vmatmul.f32.gmra.mxu0 %v1868
        %v1887 = vpop.f32.mrf.mxu0
        %v1888 = vadd.f32 0.0, %v1887
        %1889 = vdwg.mxu0
        %v1890 = vadd.f32 %v1854, %v1888
        %v1891 = vld [vmem:[#allocation3 + $0x1] sm:$0x1]
        %s1892 = scalar_lea.vmem %s9, 80
        %v1893 = vld [vmem:[%s1892] sm:$0xff]
        %v1894 = vld [vmem:[%s1892 + $0x8] sm:$0xff]
        %v1895 = vld [vmem:[%s1892 + $0x10] sm:$0xff]
        %v1896 = vld [vmem:[%s1892 + $0x18] sm:$0xff]
        %v1897 = vld [vmem:[%s1892 + $0x20] sm:$0xff]
        %v1898 = vld [vmem:[%s1892 + $0x28] sm:$0xff]
        %v1899 = vld [vmem:[%s1892 + $0x30] sm:$0xff]
        %v1900 = vld [vmem:[%s1892 + $0x38] sm:$0xff]
        %v1901 = vld [vmem:[%s1892 + $0x40] sm:$0xff]
        %v1902 = vld [vmem:[%s1892 + $0x48] sm:$0xff]
        %v1904 = vsel %vm1866, %v1891, 0
        %1906 = vmatpush.msra.mxu0 0.0
        %1907 = vmatpush.msra.mxu0 0.0
        %1908 = vmatpush.msra.mxu0 0.0
        %1909 = vmatpush.msra.mxu0 0.0
        %1910 = vmatpush.msra.mxu0 0.0
        %1911 = vmatpush.msra.mxu0 0.0
        %1912 = vmatpush.msra.mxu0 %v1902
        %1913 = vmatpush.msra.mxu0 %v1901
        %1914 = vmatpush.msra.mxu0 %v1900
        %1915 = vmatpush.msra.mxu0 %v1899
        %1916 = vmatpush.msra.mxu0 %v1898
        %1917 = vmatpush.msra.mxu0 %v1897
        %1918 = vmatpush.msra.mxu0 %v1896
        %1919 = vmatpush.msra.mxu0 %v1895
        %1920 = vmatpush.msra.mxu0 %v1894
        %1921 = vmatpush.msra.mxu0 %v1893
        %1922 = vmatmul.f32.gmra.mxu0 %v1904
        %v1923 = vpop.f32.mrf.mxu0
        %v1924 = vadd.f32 0.0, %v1923
        %1925 = vdwg.mxu0
        %v1926 = vadd.f32 %v1890, %v1924
        %v1927 = vld [vmem:[#allocation3 + $0x2] sm:$0x1]
        %s1928 = scalar_lea.vmem %s9, 160
        %v1929 = vld [vmem:[%s1928] sm:$0xff]
        %v1930 = vld [vmem:[%s1928 + $0x8] sm:$0xff]
        %v1931 = vld [vmem:[%s1928 + $0x10] sm:$0xff]
        %v1932 = vld [vmem:[%s1928 + $0x18] sm:$0xff]
        %v1933 = vld [vmem:[%s1928 + $0x20] sm:$0xff]
        %v1934 = vld [vmem:[%s1928 + $0x28] sm:$0xff]
        %v1935 = vld [vmem:[%s1928 + $0x30] sm:$0xff]
        %v1936 = vld [vmem:[%s1928 + $0x38] sm:$0xff]
        %v1937 = vld [vmem:[%s1928 + $0x40] sm:$0xff]
        %v1938 = vld [vmem:[%s1928 + $0x48] sm:$0xff]
        %v1940 = vsel %vm1866, %v1927, 0
        %1942 = vmatpush.msra.mxu0 0.0
        %1943 = vmatpush.msra.mxu0 0.0
        %1944 = vmatpush.msra.mxu0 0.0
        %1945 = vmatpush.msra.mxu0 0.0
        %1946 = vmatpush.msra.mxu0 0.0
        %1947 = vmatpush.msra.mxu0 0.0
        %1948 = vmatpush.msra.mxu0 %v1938
        %1949 = vmatpush.msra.mxu0 %v1937
        %1950 = vmatpush.msra.mxu0 %v1936
        %1951 = vmatpush.msra.mxu0 %v1935
        %1952 = vmatpush.msra.mxu0 %v1934
        %1953 = vmatpush.msra.mxu0 %v1933
        %1954 = vmatpush.msra.mxu0 %v1932
        %1955 = vmatpush.msra.mxu0 %v1931
        %1956 = vmatpush.msra.mxu0 %v1930
        %1957 = vmatpush.msra.mxu0 %v1929
        %1958 = vmatmul.f32.gmra.mxu0 %v1940
        %v1959 = vpop.f32.mrf.mxu0
        %v1960 = vadd.f32 0.0, %v1959
        %1961 = vdwg.mxu0
        %v1962 = vadd.f32 %v1926, %v1960
        %v1963 = vld [vmem:[#allocation3 + $0x3] sm:$0x1]
        %s1964 = scalar_lea.vmem %s9, 240
        %v1965 = vld [vmem:[%s1964] sm:$0xff]
        %v1966 = vld [vmem:[%s1964 + $0x8] sm:$0xff]
        %v1967 = vld [vmem:[%s1964 + $0x10] sm:$0xff]
        %v1968 = vld [vmem:[%s1964 + $0x18] sm:$0xff]
        %v1969 = vld [vmem:[%s1964 + $0x20] sm:$0xff]
        %v1970 = vld [vmem:[%s1964 + $0x28] sm:$0xff]
        %v1971 = vld [vmem:[%s1964 + $0x30] sm:$0xff]
        %v1972 = vld [vmem:[%s1964 + $0x38] sm:$0xff]
        %v1973 = vld [vmem:[%s1964 + $0x40] sm:$0xff]
        %v1974 = vld [vmem:[%s1964 + $0x48] sm:$0xff]
        %v1976 = vsel %vm1866, %v1963, 0
        %1978 = vmatpush.msra.mxu0 0.0
        %1979 = vmatpush.msra.mxu0 0.0
        %1980 = vmatpush.msra.mxu0 0.0
        %1981 = vmatpush.msra.mxu0 0.0
        %1982 = vmatpush.msra.mxu0 0.0
        %1983 = vmatpush.msra.mxu0 0.0
        %1984 = vmatpush.msra.mxu0 %v1974
        %1985 = vmatpush.msra.mxu0 %v1973
        %1986 = vmatpush.msra.mxu0 %v1972
        %1987 = vmatpush.msra.mxu0 %v1971
        %1988 = vmatpush.msra.mxu0 %v1970
        %1989 = vmatpush.msra.mxu0 %v1969
        %1990 = vmatpush.msra.mxu0 %v1968
        %1991 = vmatpush.msra.mxu0 %v1967
        %1992 = vmatpush.msra.mxu0 %v1966
        %1993 = vmatpush.msra.mxu0 %v1965
        %1994 = vmatmul.f32.gmra.mxu0 %v1976
        %v1995 = vpop.f32.mrf.mxu0
        %v1996 = vadd.f32 0.0, %v1995
        %1997 = vdwg.mxu0
        %v1998 = vadd.f32 %v1962, %v1996
        %v1999 = vld [vmem:[#allocation3 + $0x4] sm:$0x1]
        %s2000 = scalar_lea.vmem %s9, 320
        %v2001 = vld [vmem:[%s2000] sm:$0xff]
        %v2002 = vld [vmem:[%s2000 + $0x8] sm:$0xff]
        %v2003 = vld [vmem:[%s2000 + $0x10] sm:$0xff]
        %v2004 = vld [vmem:[%s2000 + $0x18] sm:$0xff]
        %v2005 = vld [vmem:[%s2000 + $0x20] sm:$0xff]
        %v2006 = vld [vmem:[%s2000 + $0x28] sm:$0xff]
        %v2007 = vld [vmem:[%s2000 + $0x30] sm:$0xff]
        %v2008 = vld [vmem:[%s2000 + $0x38] sm:$0xff]
        %v2009 = vld [vmem:[%s2000 + $0x40] sm:$0xff]
        %v2010 = vld [vmem:[%s2000 + $0x48] sm:$0xff]
        %v2012 = vsel %vm1866, %v1999, 0
        %2014 = vmatpush.msra.mxu0 0.0
        %2015 = vmatpush.msra.mxu0 0.0
        %2016 = vmatpush.msra.mxu0 0.0
        %2017 = vmatpush.msra.mxu0 0.0
        %2018 = vmatpush.msra.mxu0 0.0
        %2019 = vmatpush.msra.mxu0 0.0
        %2020 = vmatpush.msra.mxu0 %v2010
        %2021 = vmatpush.msra.mxu0 %v2009
        %2022 = vmatpush.msra.mxu0 %v2008
        %2023 = vmatpush.msra.mxu0 %v2007
        %2024 = vmatpush.msra.mxu0 %v2006
        %2025 = vmatpush.msra.mxu0 %v2005
        %2026 = vmatpush.msra.mxu0 %v2004
        %2027 = vmatpush.msra.mxu0 %v2003
        %2028 = vmatpush.msra.mxu0 %v2002
        %2029 = vmatpush.msra.mxu0 %v2001
        %2030 = vmatmul.f32.gmra.mxu0 %v2012
        %v2031 = vpop.f32.mrf.mxu0
        %v2032 = vadd.f32 0.0, %v2031
        %2033 = vdwg.mxu0
        %v2034 = vadd.f32 %v1998, %v2032
        %v2035 = vsub.f32 0.0, %v2034
        %v2036 = vmul.f32 %v2035, 1.442695
        %v2037 = vpow.pop %v2036
        %v2038 = vadd.f32 %v2037, 1.0
        %v2039 = vrcp.pop %v2038
        %v2040 = vmul.f32 %v2038, %v2039
        %v2041 = vsub.f32 1.0, %v2040
        %v2042 = vmul.f32 %v2039, %v2041
        %v2043 = vadd.f32 %v2039, %v2042
        %vm2044 = vweird.f32 %v2038
        %vm2045 = vweird.f32 %v2039
        %vm2046 = vmor %vm2044, %vm2045
        %v2047 = vsel %vm2046, %v2039, %v2043
        %v2048 = vand.u32 2147483647, %v2038
        %vm2049 = vcmp.eq.f32.partialorder %v2048, 8.507059e+37
        %v2050 = vand.u32 %v2038, 2147483648
        %v2051 = vor.u32 1.1754944e-38, %v2050
        %v2052 = vsel %vm2049, %v2051, %v2047
        %v2053 = vld [vmem:[%s11] sm:$0xff]
        %v2054 = vld [vmem:[%s11 + $0x8] sm:$0xff]
        %v2055 = vld [vmem:[%s11 + $0x10] sm:$0xff]
        %v2056 = vld [vmem:[%s11 + $0x18] sm:$0xff]
        %v2057 = vld [vmem:[%s11 + $0x20] sm:$0xff]
        %v2058 = vld [vmem:[%s11 + $0x28] sm:$0xff]
        %v2059 = vld [vmem:[%s11 + $0x30] sm:$0xff]
        %v2060 = vld [vmem:[%s11 + $0x38] sm:$0xff]
        %v2061 = vld [vmem:[%s11 + $0x40] sm:$0xff]
        %v2062 = vld [vmem:[%s11 + $0x48] sm:$0xff]
        %v2063 = vld [vmem:[%s11 + $0x50] sm:$0xff]
        %v2064 = vld [vmem:[%s11 + $0x58] sm:$0xff]
        %v2065 = vld [vmem:[%s11 + $0x60] sm:$0xff]
        %v2066 = vld [vmem:[%s11 + $0x68] sm:$0xff]
        %v2067 = vld [vmem:[%s11 + $0x70] sm:$0xff]
        %v2068 = vld [vmem:[%s12] sm:$0x1]
        %vm2069 = vcmask 982016
        %v2071 = vsel %vm2069, %v2052, 0
        %2073 = vmatpush.msra.mxu0 0.0
        %2074 = vmatpush.msra.mxu0 %v2067
        %2075 = vmatpush.msra.mxu0 %v2066
        %2076 = vmatpush.msra.mxu0 %v2065
        %2077 = vmatpush.msra.mxu0 %v2064
        %2078 = vmatpush.msra.mxu0 %v2063
        %2079 = vmatpush.msra.mxu0 %v2062
        %2080 = vmatpush.msra.mxu0 %v2061
        %2081 = vmatpush.msra.mxu0 %v2060
        %2082 = vmatpush.msra.mxu0 %v2059
        %2083 = vmatpush.msra.mxu0 %v2058
        %2084 = vmatpush.msra.mxu0 %v2057
        %2085 = vmatpush.msra.mxu0 %v2056
        %2086 = vmatpush.msra.mxu0 %v2055
        %2087 = vmatpush.msra.mxu0 %v2054
        %2088 = vmatpush.msra.mxu0 %v2053
        %2089 = vmatmul.f32.gmra.mxu0 %v2071
        %v2090 = vpop.f32.mrf.mxu0
        %v2091 = vadd.f32 %v2068, %v2090
        %2092 = vdwg.mxu0
        %v2093 = vsub.f32 0.0, %v2091
        %v2094 = vmul.f32 %v2093, 1.442695
        %v2095 = vpow.pop %v2094
        %v2096 = vadd.f32 %v2095, 1.0
        %v2097 = vrcp.pop %v2096
        %v2098 = vmul.f32 %v2096, %v2097
        %v2099 = vsub.f32 1.0, %v2098
        %v2100 = vmul.f32 %v2097, %v2099
        %v2101 = vadd.f32 %v2097, %v2100
        %vm2102 = vweird.f32 %v2096
        %vm2103 = vweird.f32 %v2097
        %vm2104 = vmor %vm2102, %vm2103
        %v2105 = vsel %vm2104, %v2097, %v2101
        %v2106 = vand.u32 2147483647, %v2096
        %vm2107 = vcmp.eq.f32.partialorder %v2106, 8.507059e+37
        %v2108 = vand.u32 %v2096, 2147483648
        %v2109 = vor.u32 1.1754944e-38, %v2108
        %v2110 = vsel %vm2107, %v2109, %v2105
        %v2111 = vld [vmem:[%s13] sm:$0xff]
        %v2112 = vld [vmem:[%s13 + $0x8] sm:$0xff]
        %v2113 = vld [vmem:[%s13 + $0x10] sm:$0xff]
        %v2114 = vld [vmem:[%s13 + $0x18] sm:$0xff]
        %v2115 = vld [vmem:[%s13 + $0x20] sm:$0xff]
        %v2116 = vld [vmem:[%s13 + $0x28] sm:$0xff]
        %v2117 = vld [vmem:[%s13 + $0x30] sm:$0xff]
        %v2118 = vld [vmem:[%s13 + $0x38] sm:$0xff]
        %v2119 = vld [vmem:[%s13 + $0x40] sm:$0xff]
        %v2120 = vld [vmem:[%s13 + $0x48] sm:$0xff]
        %v2121 = vld [vmem:[%s13 + $0x50] sm:$0xf]
        %v2122 = vld [vmem:[%s14] sm:$0x1]
        %v2124 = vsel %vm1225, %v2110, 0
        %v2127 = vsel %vm1098, %v2121, 0
        %2129 = vmatpush.msra.mxu0 0.0
        %2130 = vmatpush.msra.mxu0 0.0
        %2131 = vmatpush.msra.mxu0 0.0
        %2132 = vmatpush.msra.mxu0 0.0
        %2133 = vmatpush.msra.mxu0 0.0
        %2134 = vmatpush.msra.mxu0 %v2127
        %2135 = vmatpush.msra.mxu0 %v2120
        %2136 = vmatpush.msra.mxu0 %v2119
        %2137 = vmatpush.msra.mxu0 %v2118
        %2138 = vmatpush.msra.mxu0 %v2117
        %2139 = vmatpush.msra.mxu0 %v2116
        %2140 = vmatpush.msra.mxu0 %v2115
        %2141 = vmatpush.msra.mxu0 %v2114
        %2142 = vmatpush.msra.mxu0 %v2113
        %2143 = vmatpush.msra.mxu0 %v2112
        %2144 = vmatpush.msra.mxu0 %v2111
        %2145 = vmatmul.f32.gmra.mxu0 %v2124
        %v2146 = vpop.f32.mrf.mxu0
        %v2147 = vadd.f32 %v2122, %v2146
        %2148 = vdwg.mxu0
        %vm2149 = vcmask 73728
        %2150 = vst.msk [vmem:[%s486] sm:$0x1] %vm2149, %v2147
        %s2151 = sand.u32 %s357, 1
        %s2152 = scalar_lea.sflag [#allocation5], %s2151
        %s2153 = sand.u32 %s357, 1
        %s2154 = scalar_lea.vmem [#allocation4], %s2153
        // Predicated region
        $region81: #{lenet_forward.1} parent=79 // pred_check
          %p2155 = pneg %p367
        $region82: #{lenet_forward.1} parent=79 // pred_check_branch
          %2157 = sbr.rel (%p2155) target = $region84
        $region83: #{lenet_forward.1} parent=79 // pred_region
          %2159 = vsyncadd %s2152, 0
          %s2160 = scalar_lea.hbm %s15, %s29
          %s2162 = sshll.u32 %s2154, 4
          %s2163 = int_to_ptr.vmem [resolvable:$true] %s2162
          %s2164 = sshll.u32 %s2160, 4
          %s2165 = int_to_ptr.hbm [resolvable:$true] %s2164
          %2167 = dma.vmem_to_hbm [thread:$0]  %s2163, 16, %s2165, %s2152
        $region84: #{lenet_forward.1} parent=79 // pred_fallthru
          _
      $region80: #{lenet_forward.1} parent=5 // pred_fallthru
        _
      %p2168 = scmp.le.s32.totalorder 2, %s24
      // Predicated region
      $region85: #{lenet_forward.1} parent=5 // pred_check
        %p2169 = pneg %p2168
      $region86: #{lenet_forward.1} parent=5 // pred_check_branch
        %2171 = sbr.rel (%p2169) target = $region88
      $region87: #{lenet_forward.1} parent=5 // pred_region
        %s2172 = ssub.s32 %s24, 2
        // Predicated region
        $region89: #{lenet_forward.1} parent=87 // pred_check
          %p2173 = pneg %p373
        $region90: #{lenet_forward.1} parent=87 // pred_check_branch
          %2175 = sbr.rel (%p2173) target = $region92
        $region91: #{lenet_forward.1} parent=87 // pred_region
          %s2176 = sand.u32 %s358, 1
          %s2177 = scalar_lea.sflag [#allocation5], %s2176
          %s2178 = sand.u32 %s358, 1
          %s2179 = scalar_lea.vmem [#allocation4], %s2178
          %2181 = dma.done %s2177, 16
        $region92: #{lenet_forward.1} parent=87 // pred_fallthru
          _
      $region88: #{lenet_forward.1} parent=5 // pred_fallthru
        _
    $region6: #{lenet_forward.1} parent=1 // loop_footer
      %s28 = sadd.s32 1, %s24
    $region7: #{lenet_forward.1} parent=1 // loop_footer_branch
      %23 = sbr.rel target = $region3
    $region8: #{lenet_forward.1} parent=1 // loop_exit
      _
    %2182 = vsyncpa [#allocation5], 1
    %s2183 = scalar_lea.sflag [#allocation5], 1
    %2184 = vsyncpa %s2183, 1

</llo_original>
